<compile_context>
chip_gen: v7x
topology: tpu7x:2x2x1
jax: 0.10.0
libtpu: 0.0.40
codegen_flags: <defaults>
</compile_context>

<pallas_src>
import jax
import jax.numpy as jnp
import numpy as np
from jax.experimental import pallas as pl
from jax.experimental.pallas import tpu as pltpu


def _const_spec(shape):
    # Whole-array block, constant index_map -> stays VMEM-resident across the grid.
    return pl.BlockSpec(shape, lambda j, _n=len(shape): (0,) * _n)


def make_fused_kernel(filter_sizes, B_pad, S, H, F):
    """Fused features + tiled FC kernel.  Grid axis = item_num tiles."""
    T = sum(filter_sizes)

    def kernel(x3_ref, xv_ref, wh_ref, bh_ref, wvb_ref, bvb_ref,
               wfc_ref, bfc_ref, out_ref):
        # ---- horizontal conv bank: ONE matmul for every tap of every filter ----
        # (B_pad, S, H) -> (B_pad*S, H): tile-aligned leading-dim merge (S, B_pad
        # are multiples of 8 in this config).
        x2d = x3_ref[...].reshape(B_pad * S, H)
        y = jnp.dot(x2d, wh_ref[...], preferred_element_type=jnp.float32)
        y = y.reshape(B_pad, S, T * F)                    # (B_pad, S, T*F)

        bh = bh_ref[...]                                  # (nfs, F)
        pooled = []
        col = 0
        for i, fs in enumerate(filter_sizes):
            L = S - fs + 1
            bias = bh[i:i + 1, :]                         # (1, F)
            mx = None
            for p in range(L):                            # shift-add over taps
                acc = bias
                for k in range(fs):
                    acc = acc + y[:, p + k, col + k * F: col + (k + 1) * F]
                acc = jnp.maximum(acc, 0.0)               # ReLU
                mx = acc if mx is None else jnp.maximum(mx, acc)   # max-pool
            pooled.append(mx)                             # (B_pad, F)
            col += fs * F

        # ---- vertical conv: single lane-dense matmul, output already (B, F*H) ----
        vflat = jnp.maximum(
            jnp.dot(xv_ref[...], wvb_ref[...],
                    preferred_element_type=jnp.float32) + bvb_ref[...],
            0.0)                                          # (B_pad, F*H)

        # ---- concat -> (B_pad, final_dim), then tiled FC matmul (bf16 weights) ----
        feat = jnp.concatenate(pooled + [vflat], axis=1)  # (B_pad, final_dim)
        # TODO(synk): training-mode dropout not implemented; eval semantics (identity).
        out_ref[...] = (
            jnp.dot(feat.astype(jnp.bfloat16), wfc_ref[...],
                    preferred_element_type=jnp.float32)
            + bfc_ref[...])

    return kernel


class CaserPallas:
    def __init__(self, hidden_size, item_num, state_size, num_filters,
                 filter_sizes, dropout_rate, key):
        self.hidden_size = hidden_size
        self.item_num = int(item_num)
        self.state_size = state_size
        self.filter_sizes = list(filter_sizes)
        self.num_filters = num_filters
        self.dropout_rate = dropout_rate
        self.num_filters_total = num_filters * len(self.filter_sizes)
        self.vertical_dim = num_filters * hidden_size
        self.final_dim = self.vertical_dim + self.num_filters_total

        keys = jax.random.split(key, 4 + 2 * len(self.filter_sizes))
        # item_embeddings ~ N(0, 0.01), shape (item_num+1, hidden)
        self.emb_table = 0.01 * jax.random.normal(
            keys[0], (self.item_num + 1, hidden_size), jnp.float32)
        # horizontal convs: weight (F, fs, H) (PyTorch (F,1,fs,H) squeezed), bias (F,)
        self.wh, self.bh = [], []
        for i, fs in enumerate(self.filter_sizes):
            self.wh.append(0.1 * jax.random.normal(
                keys[1 + 2 * i], (num_filters, fs, hidden_size), jnp.float32))
            self.bh.append(0.1 * jax.random.normal(
                keys[2 + 2 * i], (num_filters,), jnp.float32))
        # vertical conv: weight (F, S) (PyTorch (F,1,S,1) squeezed), bias (F,)
        self.wv = 0.1 * jax.random.normal(
            keys[-3], (num_filters, state_size), jnp.float32)
        self.bv = 0.1 * jax.random.normal(keys[-2], (num_filters,), jnp.float32)
        # fc: PyTorch layout weight (item_num, final_dim), bias (item_num,)
        self.wfc = 0.1 * jax.random.normal(
            keys[-1], (self.item_num, self.final_dim), jnp.float32)
        self.bfc = jnp.zeros((self.item_num,), jnp.float32)

        # ---------- precomputed (once) kernel-friendly packings ----------
        H, S, F = hidden_size, state_size, num_filters
        # All horizontal taps concatenated along the output dim: (H, sum(fs)*F).
        cols = []
        for i, fs in enumerate(self.filter_sizes):
            for k in range(fs):
                cols.append(self.wh[i][:, k, :].T)        # (H, F)
        self.wh_all = jnp.concatenate(cols, axis=1)
        self.bh_all = jnp.stack(self.bh, axis=0)          # (nfs, F)
        # Vertical conv as a block-diagonal-expanded matrix: (S*H, F*H) with
        # wv_big[s*H+h, f*H+h] = wv[f, s]  -> v_flat = x_flat @ wv_big.
        eye = jnp.eye(H, dtype=jnp.float32)
        self.wv_big = (self.wv.T[:, None, :, None] * eye[None, :, None, :]
                       ).reshape(S * H, F * H)
        self.bv_big = jnp.repeat(self.bv, H)[None, :]     # (1, F*H)
        # FC weight: transpose + pad item_num to a 128-multiple tile + bf16.
        if self.item_num >= 512:
            self.tile_n = 512
        else:
            self.tile_n = 128 * ((self.item_num + 127) // 128)
        self.item_num_pad = self.tile_n * (
            (self.item_num + self.tile_n - 1) // self.tile_n)
        wfc_t = jnp.zeros((self.final_dim, self.item_num_pad), jnp.float32)
        wfc_t = wfc_t.at[:, :self.item_num].set(self.wfc.T)
        self.wfc_t = wfc_t.astype(jnp.bfloat16)           # bf16 halves HBM bytes
        bfc_pad = jnp.zeros((1, self.item_num_pad), jnp.float32)
        self.bfc_pad = bfc_pad.at[0, :self.item_num].set(self.bfc)

    def __call__(self, inputs, inputs_lengths=None):
        # inputs_lengths is unused by the PyTorch forward as well.
        B = inputs.shape[0]
        S, H, F = self.state_size, self.hidden_size, self.num_filters
        B_pad = ((B + 7) // 8) * 8                         # sublane-align batch

        # ---- glue: embedding lookup + padding-item mask (elementwise) ----
        emb = self.emb_table[inputs]                                   # (B, S, H)
        mask = (inputs != self.item_num).astype(jnp.float32)[:, :, None]
        emb_m = emb * mask
        if B_pad != B:
            emb_m = jnp.pad(emb_m, ((0, B_pad - B), (0, 0), (0, 0)))
        x3 = emb_m                                                     # (B_pad,S,H)
        xv = emb_m.reshape(B_pad, S * H)                               # (B_pad,S*H)

        grid = (self.item_num_pad // self.tile_n,)
        kernel = make_fused_kernel(self.filter_sizes, B_pad, S, H, F)
        fn = pl.pallas_call(
            kernel,
            grid=grid,
            in_specs=[
                _const_spec((B_pad, S, H)),                # x3 (VMEM-resident)
                _const_spec((B_pad, S * H)),               # xv
                _const_spec(self.wh_all.shape),            # packed horiz taps
                _const_spec(self.bh_all.shape),            # horiz biases
                _const_spec(self.wv_big.shape),            # expanded vert weight
                _const_spec(self.bv_big.shape),            # vert bias slab
                pl.BlockSpec((self.final_dim, self.tile_n), lambda j: (0, j)),
                pl.BlockSpec((1, self.tile_n), lambda j: (0, j)),
            ],
            out_specs=pl.BlockSpec((B_pad, self.tile_n), lambda j: (0, j)),
            out_shape=jax.ShapeDtypeStruct((B_pad, self.item_num_pad),
                                           jnp.float32),
            compiler_params=pltpu.CompilerParams(
                dimension_semantics=("parallel",)),
        )
        out = fn(x3, xv, self.wh_all, self.bh_all, self.wv_big, self.bv_big,
                 self.wfc_t, self.bfc_pad)
        return out[:B, :self.item_num]


def reference_forward(model, inputs):
    """Pure-JAX (XLA) reference matching the PyTorch forward semantics.

    The FC uses the same bf16-quantized weights/activations as the kernel so
    the comparison isolates kernel correctness rather than bf16 rounding."""
    emb = model.emb_table[inputs]
    mask = (inputs != model.item_num).astype(jnp.float32)[:, :, None]
    emb = emb * mask
    B, S, H = emb.shape
    pooled = []
    for i, fs in enumerate(model.filter_sizes):
        L = S - fs + 1
        wins = jnp.stack([emb[:, p:p + fs, :] for p in range(L)], axis=1)
        conv = jnp.einsum('blkd,fkd->blf', wins, model.wh[i]) + model.bh[i]
        pooled.append(jax.nn.relu(conv).max(axis=1))
    h_pool = jnp.concatenate(pooled, axis=1)
    v = jnp.einsum('bsd,fs->bfd', emb, model.wv) + model.bv[None, :, None]
    v_flat = jax.nn.relu(v).reshape(B, -1)
    feat = jnp.concatenate([h_pool, v_flat], axis=1)
    feat_q = feat.astype(jnp.bfloat16).astype(jnp.float32)
    wfc_q = model.wfc.astype(jnp.bfloat16).astype(jnp.float32)
    return feat_q @ wfc_q.T + model.bfc


if __name__ == "__main__":
    hidden_size = 32
    item_num = 600           # exercises item_num padding (-> 1024) and grid=2
    state_size = 8
    num_filters = 4
    filter_sizes = [2, 3, 4]
    dropout_rate = 0.5
    batch = 4

    key = jax.random.PRNGKey(0)
    k_model, k_inp, k_len = jax.random.split(key, 3)

    model = CaserPallas(hidden_size, item_num, state_size, num_filters,
                        filter_sizes, dropout_rate, k_model)

    # items in [0, item_num]; index == item_num is the padding token (masked out)
    inputs = jax.random.randint(k_inp, (batch, state_size), 0, item_num + 1,
                                dtype=jnp.int32)
    inputs_lengths = jax.random.randint(k_len, (batch,), 1, state_size + 1,
                                        dtype=jnp.int32)

    out = model(inputs, inputs_lengths)
    out = jax.block_until_ready(out)

    ref = jax.block_until_ready(reference_forward(model, inputs))
    np.testing.assert_allclose(np.asarray(out), np.asarray(ref),
                               rtol=1e-2, atol=5e-4)
    assert out.shape == (batch, item_num)

    print("KERNEL_OK")
</pallas_src>

<mosaic_0001>
module attributes {stable_mosaic.version = 11 : i64} {
  func.func @kernel(%arg0: i32, %arg1: memref<8x8x32xf32, #tpu.memory_space<vmem>>, %arg2: memref<8x256xf32, #tpu.memory_space<vmem>>, %arg3: memref<32x36xf32, #tpu.memory_space<vmem>>, %arg4: memref<3x4xf32, #tpu.memory_space<vmem>>, %arg5: memref<256x128xf32, #tpu.memory_space<vmem>>, %arg6: memref<1x128xf32, #tpu.memory_space<vmem>>, %arg7: memref<140x512xbf16, #tpu.memory_space<vmem>>, %arg8: memref<1x512xf32, #tpu.memory_space<vmem>>, %arg9: memref<8x512xf32, #tpu.memory_space<vmem>>) attributes {dimension_semantics = [#tpu.dimension_semantics<parallel>], iteration_bounds = array<i64: 2>, scalar_prefetch = 0 : i64, scratch_operands = 0 : i64, tpu.core_type = #tpu.core_type<tc>, window_params = [{pipeline_mode = #tpu.pipeline_mode<synchronous>, transform_indices = @transform_0, window_bounds = array<i64: 8, 8, 32>}, {pipeline_mode = #tpu.pipeline_mode<synchronous>, transform_indices = @transform_1, window_bounds = array<i64: 8, 256>}, {pipeline_mode = #tpu.pipeline_mode<synchronous>, transform_indices = @transform_2, window_bounds = array<i64: 32, 36>}, {pipeline_mode = #tpu.pipeline_mode<synchronous>, transform_indices = @transform_3, window_bounds = array<i64: 3, 4>}, {pipeline_mode = #tpu.pipeline_mode<synchronous>, transform_indices = @transform_4, window_bounds = array<i64: 256, 128>}, {pipeline_mode = #tpu.pipeline_mode<synchronous>, transform_indices = @transform_5, window_bounds = array<i64: 1, 128>}, {transform_indices = @transform_6, window_bounds = array<i64: 140, 512>}, {transform_indices = @transform_7, window_bounds = array<i64: 1, 512>}, {transform_indices = @transform_8, window_bounds = array<i64: 8, 512>}]} {
    %c0 = arith.constant 0 : index
    %c0_0 = arith.constant 0 : index
    %c0_1 = arith.constant 0 : index
    %0 = vector.load %arg1[%c0, %c0_0, %c0_1] : memref<8x8x32xf32, #tpu.memory_space<vmem>>, vector<8x8x32xf32>
    %1 = vector.shape_cast %0 : vector<8x8x32xf32> to vector<64x32xf32>
    %c0_2 = arith.constant 0 : index
    %c0_3 = arith.constant 0 : index
    %2 = vector.load %arg3[%c0_2, %c0_3] : memref<32x36xf32, #tpu.memory_space<vmem>>, vector<32x36xf32>
    %cst = arith.constant dense<0.000000e+00> : vector<64x36xf32>
    %3 = tpu.matmul %1, %2, %cst {dimension_numbers = #tpu.dot_dimension_numbers<[1], [0], [0], [1], [0, 0, 1, 1], [], []>} : vector<64x32xf32>, vector<32x36xf32>, vector<64x36xf32> -> vector<64x36xf32>
    %4 = vector.shape_cast %3 : vector<64x36xf32> to vector<8x8x36xf32>
    %c0_4 = arith.constant 0 : index
    %c0_5 = arith.constant 0 : index
    %5 = vector.load %arg4[%c0_4, %c0_5] : memref<3x4xf32, #tpu.memory_space<vmem>>, vector<3x4xf32>
    %6 = vector.extract_strided_slice %5 {offsets = [0, 0], sizes = [1, 4], strides = [1, 1]} : vector<3x4xf32> to vector<1x4xf32>
    %7 = vector.extract_strided_slice %4 {offsets = [0, 0, 0], sizes = [8, 1, 4], strides = [1, 1, 1]} : vector<8x8x36xf32> to vector<8x1x4xf32>
    %8 = vector.shape_cast %7 : vector<8x1x4xf32> to vector<8x4xf32>
    %9 = vector.broadcast %6 : vector<1x4xf32> to vector<8x4xf32>
    %10 = arith.addf %9, %8 : vector<8x4xf32>
    %11 = vector.extract_strided_slice %4 {offsets = [0, 1, 4], sizes = [8, 1, 4], strides = [1, 1, 1]} : vector<8x8x36xf32> to vector<8x1x4xf32>
    %12 = vector.shape_cast %11 : vector<8x1x4xf32> to vector<8x4xf32>
    %13 = arith.addf %10, %12 : vector<8x4xf32>
    %cst_6 = arith.constant 0.000000e+00 : f32
    %14 = vector.broadcast %cst_6 : f32 to vector<8x4xf32>
    %15 = arith.maximumf %13, %14 : vector<8x4xf32>
    %16 = vector.extract_strided_slice %4 {offsets = [0, 1, 0], sizes = [8, 1, 4], strides = [1, 1, 1]} : vector<8x8x36xf32> to vector<8x1x4xf32>
    %17 = vector.shape_cast %16 : vector<8x1x4xf32> to vector<8x4xf32>
    %18 = vector.broadcast %6 : vector<1x4xf32> to vector<8x4xf32>
    %19 = arith.addf %18, %17 : vector<8x4xf32>
    %20 = vector.extract_strided_slice %4 {offsets = [0, 2, 4], sizes = [8, 1, 4], strides = [1, 1, 1]} : vector<8x8x36xf32> to vector<8x1x4xf32>
    %21 = vector.shape_cast %20 : vector<8x1x4xf32> to vector<8x4xf32>
    %22 = arith.addf %19, %21 : vector<8x4xf32>
    %cst_7 = arith.constant 0.000000e+00 : f32
    %23 = vector.broadcast %cst_7 : f32 to vector<8x4xf32>
    %24 = arith.maximumf %22, %23 : vector<8x4xf32>
    %25 = arith.maximumf %15, %24 : vector<8x4xf32>
    %26 = vector.extract_strided_slice %4 {offsets = [0, 2, 0], sizes = [8, 1, 4], strides = [1, 1, 1]} : vector<8x8x36xf32> to vector<8x1x4xf32>
    %27 = vector.shape_cast %26 : vector<8x1x4xf32> to vector<8x4xf32>
    %28 = vector.broadcast %6 : vector<1x4xf32> to vector<8x4xf32>
    %29 = arith.addf %28, %27 : vector<8x4xf32>
    %30 = vector.extract_strided_slice %4 {offsets = [0, 3, 4], sizes = [8, 1, 4], strides = [1, 1, 1]} : vector<8x8x36xf32> to vector<8x1x4xf32>
    %31 = vector.shape_cast %30 : vector<8x1x4xf32> to vector<8x4xf32>
    %32 = arith.addf %29, %31 : vector<8x4xf32>
    %cst_8 = arith.constant 0.000000e+00 : f32
    %33 = vector.broadcast %cst_8 : f32 to vector<8x4xf32>
    %34 = arith.maximumf %32, %33 : vector<8x4xf32>
    %35 = arith.maximumf %25, %34 : vector<8x4xf32>
    %36 = vector.extract_strided_slice %4 {offsets = [0, 3, 0], sizes = [8, 1, 4], strides = [1, 1, 1]} : vector<8x8x36xf32> to vector<8x1x4xf32>
    %37 = vector.shape_cast %36 : vector<8x1x4xf32> to vector<8x4xf32>
    %38 = vector.broadcast %6 : vector<1x4xf32> to vector<8x4xf32>
    %39 = arith.addf %38, %37 : vector<8x4xf32>
    %40 = vector.extract_strided_slice %4 {offsets = [0, 4, 4], sizes = [8, 1, 4], strides = [1, 1, 1]} : vector<8x8x36xf32> to vector<8x1x4xf32>
    %41 = vector.shape_cast %40 : vector<8x1x4xf32> to vector<8x4xf32>
    %42 = arith.addf %39, %41 : vector<8x4xf32>
    %cst_9 = arith.constant 0.000000e+00 : f32
    %43 = vector.broadcast %cst_9 : f32 to vector<8x4xf32>
    %44 = arith.maximumf %42, %43 : vector<8x4xf32>
    %45 = arith.maximumf %35, %44 : vector<8x4xf32>
    %46 = vector.extract_strided_slice %4 {offsets = [0, 4, 0], sizes = [8, 1, 4], strides = [1, 1, 1]} : vector<8x8x36xf32> to vector<8x1x4xf32>
    %47 = vector.shape_cast %46 : vector<8x1x4xf32> to vector<8x4xf32>
    %48 = vector.broadcast %6 : vector<1x4xf32> to vector<8x4xf32>
    %49 = arith.addf %48, %47 : vector<8x4xf32>
    %50 = vector.extract_strided_slice %4 {offsets = [0, 5, 4], sizes = [8, 1, 4], strides = [1, 1, 1]} : vector<8x8x36xf32> to vector<8x1x4xf32>
    %51 = vector.shape_cast %50 : vector<8x1x4xf32> to vector<8x4xf32>
    %52 = arith.addf %49, %51 : vector<8x4xf32>
    %cst_10 = arith.constant 0.000000e+00 : f32
    %53 = vector.broadcast %cst_10 : f32 to vector<8x4xf32>
    %54 = arith.maximumf %52, %53 : vector<8x4xf32>
    %55 = arith.maximumf %45, %54 : vector<8x4xf32>
    %56 = vector.extract_strided_slice %4 {offsets = [0, 5, 0], sizes = [8, 1, 4], strides = [1, 1, 1]} : vector<8x8x36xf32> to vector<8x1x4xf32>
    %57 = vector.shape_cast %56 : vector<8x1x4xf32> to vector<8x4xf32>
    %58 = vector.broadcast %6 : vector<1x4xf32> to vector<8x4xf32>
    %59 = arith.addf %58, %57 : vector<8x4xf32>
    %60 = vector.extract_strided_slice %4 {offsets = [0, 6, 4], sizes = [8, 1, 4], strides = [1, 1, 1]} : vector<8x8x36xf32> to vector<8x1x4xf32>
    %61 = vector.shape_cast %60 : vector<8x1x4xf32> to vector<8x4xf32>
    %62 = arith.addf %59, %61 : vector<8x4xf32>
    %cst_11 = arith.constant 0.000000e+00 : f32
    %63 = vector.broadcast %cst_11 : f32 to vector<8x4xf32>
    %64 = arith.maximumf %62, %63 : vector<8x4xf32>
    %65 = arith.maximumf %55, %64 : vector<8x4xf32>
    %66 = vector.extract_strided_slice %4 {offsets = [0, 6, 0], sizes = [8, 1, 4], strides = [1, 1, 1]} : vector<8x8x36xf32> to vector<8x1x4xf32>
    %67 = vector.shape_cast %66 : vector<8x1x4xf32> to vector<8x4xf32>
    %68 = vector.broadcast %6 : vector<1x4xf32> to vector<8x4xf32>
    %69 = arith.addf %68, %67 : vector<8x4xf32>
    %70 = vector.extract_strided_slice %4 {offsets = [0, 7, 4], sizes = [8, 1, 4], strides = [1, 1, 1]} : vector<8x8x36xf32> to vector<8x1x4xf32>
    %71 = vector.shape_cast %70 : vector<8x1x4xf32> to vector<8x4xf32>
    %72 = arith.addf %69, %71 : vector<8x4xf32>
    %cst_12 = arith.constant 0.000000e+00 : f32
    %73 = vector.broadcast %cst_12 : f32 to vector<8x4xf32>
    %74 = arith.maximumf %72, %73 : vector<8x4xf32>
    %75 = arith.maximumf %65, %74 : vector<8x4xf32>
    %76 = vector.extract_strided_slice %5 {offsets = [1, 0], sizes = [1, 4], strides = [1, 1]} : vector<3x4xf32> to vector<1x4xf32>
    %77 = vector.extract_strided_slice %4 {offsets = [0, 0, 8], sizes = [8, 1, 4], strides = [1, 1, 1]} : vector<8x8x36xf32> to vector<8x1x4xf32>
    %78 = vector.shape_cast %77 : vector<8x1x4xf32> to vector<8x4xf32>
    %79 = vector.broadcast %76 : vector<1x4xf32> to vector<8x4xf32>
    %80 = arith.addf %79, %78 : vector<8x4xf32>
    %81 = vector.extract_strided_slice %4 {offsets = [0, 1, 12], sizes = [8, 1, 4], strides = [1, 1, 1]} : vector<8x8x36xf32> to vector<8x1x4xf32>
    %82 = vector.shape_cast %81 : vector<8x1x4xf32> to vector<8x4xf32>
    %83 = arith.addf %80, %82 : vector<8x4xf32>
    %84 = vector.extract_strided_slice %4 {offsets = [0, 2, 16], sizes = [8, 1, 4], strides = [1, 1, 1]} : vector<8x8x36xf32> to vector<8x1x4xf32>
    %85 = vector.shape_cast %84 : vector<8x1x4xf32> to vector<8x4xf32>
    %86 = arith.addf %83, %85 : vector<8x4xf32>
    %cst_13 = arith.constant 0.000000e+00 : f32
    %87 = vector.broadcast %cst_13 : f32 to vector<8x4xf32>
    %88 = arith.maximumf %86, %87 : vector<8x4xf32>
    %89 = vector.extract_strided_slice %4 {offsets = [0, 1, 8], sizes = [8, 1, 4], strides = [1, 1, 1]} : vector<8x8x36xf32> to vector<8x1x4xf32>
    %90 = vector.shape_cast %89 : vector<8x1x4xf32> to vector<8x4xf32>
    %91 = vector.broadcast %76 : vector<1x4xf32> to vector<8x4xf32>
    %92 = arith.addf %91, %90 : vector<8x4xf32>
    %93 = vector.extract_strided_slice %4 {offsets = [0, 2, 12], sizes = [8, 1, 4], strides = [1, 1, 1]} : vector<8x8x36xf32> to vector<8x1x4xf32>
    %94 = vector.shape_cast %93 : vector<8x1x4xf32> to vector<8x4xf32>
    %95 = arith.addf %92, %94 : vector<8x4xf32>
    %96 = vector.extract_strided_slice %4 {offsets = [0, 3, 16], sizes = [8, 1, 4], strides = [1, 1, 1]} : vector<8x8x36xf32> to vector<8x1x4xf32>
    %97 = vector.shape_cast %96 : vector<8x1x4xf32> to vector<8x4xf32>
    %98 = arith.addf %95, %97 : vector<8x4xf32>
    %cst_14 = arith.constant 0.000000e+00 : f32
    %99 = vector.broadcast %cst_14 : f32 to vector<8x4xf32>
    %100 = arith.maximumf %98, %99 : vector<8x4xf32>
    %101 = arith.maximumf %88, %100 : vector<8x4xf32>
    %102 = vector.extract_strided_slice %4 {offsets = [0, 2, 8], sizes = [8, 1, 4], strides = [1, 1, 1]} : vector<8x8x36xf32> to vector<8x1x4xf32>
    %103 = vector.shape_cast %102 : vector<8x1x4xf32> to vector<8x4xf32>
    %104 = vector.broadcast %76 : vector<1x4xf32> to vector<8x4xf32>
    %105 = arith.addf %104, %103 : vector<8x4xf32>
    %106 = vector.extract_strided_slice %4 {offsets = [0, 3, 12], sizes = [8, 1, 4], strides = [1, 1, 1]} : vector<8x8x36xf32> to vector<8x1x4xf32>
    %107 = vector.shape_cast %106 : vector<8x1x4xf32> to vector<8x4xf32>
    %108 = arith.addf %105, %107 : vector<8x4xf32>
    %109 = vector.extract_strided_slice %4 {offsets = [0, 4, 16], sizes = [8, 1, 4], strides = [1, 1, 1]} : vector<8x8x36xf32> to vector<8x1x4xf32>
    %110 = vector.shape_cast %109 : vector<8x1x4xf32> to vector<8x4xf32>
    %111 = arith.addf %108, %110 : vector<8x4xf32>
    %cst_15 = arith.constant 0.000000e+00 : f32
    %112 = vector.broadcast %cst_15 : f32 to vector<8x4xf32>
    %113 = arith.maximumf %111, %112 : vector<8x4xf32>
    %114 = arith.maximumf %101, %113 : vector<8x4xf32>
    %115 = vector.extract_strided_slice %4 {offsets = [0, 3, 8], sizes = [8, 1, 4], strides = [1, 1, 1]} : vector<8x8x36xf32> to vector<8x1x4xf32>
    %116 = vector.shape_cast %115 : vector<8x1x4xf32> to vector<8x4xf32>
    %117 = vector.broadcast %76 : vector<1x4xf32> to vector<8x4xf32>
    %118 = arith.addf %117, %116 : vector<8x4xf32>
    %119 = vector.extract_strided_slice %4 {offsets = [0, 4, 12], sizes = [8, 1, 4], strides = [1, 1, 1]} : vector<8x8x36xf32> to vector<8x1x4xf32>
    %120 = vector.shape_cast %119 : vector<8x1x4xf32> to vector<8x4xf32>
    %121 = arith.addf %118, %120 : vector<8x4xf32>
    %122 = vector.extract_strided_slice %4 {offsets = [0, 5, 16], sizes = [8, 1, 4], strides = [1, 1, 1]} : vector<8x8x36xf32> to vector<8x1x4xf32>
    %123 = vector.shape_cast %122 : vector<8x1x4xf32> to vector<8x4xf32>
    %124 = arith.addf %121, %123 : vector<8x4xf32>
    %cst_16 = arith.constant 0.000000e+00 : f32
    %125 = vector.broadcast %cst_16 : f32 to vector<8x4xf32>
    %126 = arith.maximumf %124, %125 : vector<8x4xf32>
    %127 = arith.maximumf %114, %126 : vector<8x4xf32>
    %128 = vector.extract_strided_slice %4 {offsets = [0, 4, 8], sizes = [8, 1, 4], strides = [1, 1, 1]} : vector<8x8x36xf32> to vector<8x1x4xf32>
    %129 = vector.shape_cast %128 : vector<8x1x4xf32> to vector<8x4xf32>
    %130 = vector.broadcast %76 : vector<1x4xf32> to vector<8x4xf32>
    %131 = arith.addf %130, %129 : vector<8x4xf32>
    %132 = vector.extract_strided_slice %4 {offsets = [0, 5, 12], sizes = [8, 1, 4], strides = [1, 1, 1]} : vector<8x8x36xf32> to vector<8x1x4xf32>
    %133 = vector.shape_cast %132 : vector<8x1x4xf32> to vector<8x4xf32>
    %134 = arith.addf %131, %133 : vector<8x4xf32>
    %135 = vector.extract_strided_slice %4 {offsets = [0, 6, 16], sizes = [8, 1, 4], strides = [1, 1, 1]} : vector<8x8x36xf32> to vector<8x1x4xf32>
    %136 = vector.shape_cast %135 : vector<8x1x4xf32> to vector<8x4xf32>
    %137 = arith.addf %134, %136 : vector<8x4xf32>
    %cst_17 = arith.constant 0.000000e+00 : f32
    %138 = vector.broadcast %cst_17 : f32 to vector<8x4xf32>
    %139 = arith.maximumf %137, %138 : vector<8x4xf32>
    %140 = arith.maximumf %127, %139 : vector<8x4xf32>
    %141 = vector.extract_strided_slice %4 {offsets = [0, 5, 8], sizes = [8, 1, 4], strides = [1, 1, 1]} : vector<8x8x36xf32> to vector<8x1x4xf32>
    %142 = vector.shape_cast %141 : vector<8x1x4xf32> to vector<8x4xf32>
    %143 = vector.broadcast %76 : vector<1x4xf32> to vector<8x4xf32>
    %144 = arith.addf %143, %142 : vector<8x4xf32>
    %145 = vector.extract_strided_slice %4 {offsets = [0, 6, 12], sizes = [8, 1, 4], strides = [1, 1, 1]} : vector<8x8x36xf32> to vector<8x1x4xf32>
    %146 = vector.shape_cast %145 : vector<8x1x4xf32> to vector<8x4xf32>
    %147 = arith.addf %144, %146 : vector<8x4xf32>
    %148 = vector.extract_strided_slice %4 {offsets = [0, 7, 16], sizes = [8, 1, 4], strides = [1, 1, 1]} : vector<8x8x36xf32> to vector<8x1x4xf32>
    %149 = vector.shape_cast %148 : vector<8x1x4xf32> to vector<8x4xf32>
    %150 = arith.addf %147, %149 : vector<8x4xf32>
    %cst_18 = arith.constant 0.000000e+00 : f32
    %151 = vector.broadcast %cst_18 : f32 to vector<8x4xf32>
    %152 = arith.maximumf %150, %151 : vector<8x4xf32>
    %153 = arith.maximumf %140, %152 : vector<8x4xf32>
    %154 = vector.extract_strided_slice %5 {offsets = [2, 0], sizes = [1, 4], strides = [1, 1]} : vector<3x4xf32> to vector<1x4xf32>
    %155 = vector.extract_strided_slice %4 {offsets = [0, 0, 20], sizes = [8, 1, 4], strides = [1, 1, 1]} : vector<8x8x36xf32> to vector<8x1x4xf32>
    %156 = vector.shape_cast %155 : vector<8x1x4xf32> to vector<8x4xf32>
    %157 = vector.broadcast %154 : vector<1x4xf32> to vector<8x4xf32>
    %158 = arith.addf %157, %156 : vector<8x4xf32>
    %159 = vector.extract_strided_slice %4 {offsets = [0, 1, 24], sizes = [8, 1, 4], strides = [1, 1, 1]} : vector<8x8x36xf32> to vector<8x1x4xf32>
    %160 = vector.shape_cast %159 : vector<8x1x4xf32> to vector<8x4xf32>
    %161 = arith.addf %158, %160 : vector<8x4xf32>
    %162 = vector.extract_strided_slice %4 {offsets = [0, 2, 28], sizes = [8, 1, 4], strides = [1, 1, 1]} : vector<8x8x36xf32> to vector<8x1x4xf32>
    %163 = vector.shape_cast %162 : vector<8x1x4xf32> to vector<8x4xf32>
    %164 = arith.addf %161, %163 : vector<8x4xf32>
    %165 = vector.extract_strided_slice %4 {offsets = [0, 3, 32], sizes = [8, 1, 4], strides = [1, 1, 1]} : vector<8x8x36xf32> to vector<8x1x4xf32>
    %166 = vector.shape_cast %165 : vector<8x1x4xf32> to vector<8x4xf32>
    %167 = arith.addf %164, %166 : vector<8x4xf32>
    %cst_19 = arith.constant 0.000000e+00 : f32
    %168 = vector.broadcast %cst_19 : f32 to vector<8x4xf32>
    %169 = arith.maximumf %167, %168 : vector<8x4xf32>
    %170 = vector.extract_strided_slice %4 {offsets = [0, 1, 20], sizes = [8, 1, 4], strides = [1, 1, 1]} : vector<8x8x36xf32> to vector<8x1x4xf32>
    %171 = vector.shape_cast %170 : vector<8x1x4xf32> to vector<8x4xf32>
    %172 = vector.broadcast %154 : vector<1x4xf32> to vector<8x4xf32>
    %173 = arith.addf %172, %171 : vector<8x4xf32>
    %174 = vector.extract_strided_slice %4 {offsets = [0, 2, 24], sizes = [8, 1, 4], strides = [1, 1, 1]} : vector<8x8x36xf32> to vector<8x1x4xf32>
    %175 = vector.shape_cast %174 : vector<8x1x4xf32> to vector<8x4xf32>
    %176 = arith.addf %173, %175 : vector<8x4xf32>
    %177 = vector.extract_strided_slice %4 {offsets = [0, 3, 28], sizes = [8, 1, 4], strides = [1, 1, 1]} : vector<8x8x36xf32> to vector<8x1x4xf32>
    %178 = vector.shape_cast %177 : vector<8x1x4xf32> to vector<8x4xf32>
    %179 = arith.addf %176, %178 : vector<8x4xf32>
    %180 = vector.extract_strided_slice %4 {offsets = [0, 4, 32], sizes = [8, 1, 4], strides = [1, 1, 1]} : vector<8x8x36xf32> to vector<8x1x4xf32>
    %181 = vector.shape_cast %180 : vector<8x1x4xf32> to vector<8x4xf32>
    %182 = arith.addf %179, %181 : vector<8x4xf32>
    %cst_20 = arith.constant 0.000000e+00 : f32
    %183 = vector.broadcast %cst_20 : f32 to vector<8x4xf32>
    %184 = arith.maximumf %182, %183 : vector<8x4xf32>
    %185 = arith.maximumf %169, %184 : vector<8x4xf32>
    %186 = vector.extract_strided_slice %4 {offsets = [0, 2, 20], sizes = [8, 1, 4], strides = [1, 1, 1]} : vector<8x8x36xf32> to vector<8x1x4xf32>
    %187 = vector.shape_cast %186 : vector<8x1x4xf32> to vector<8x4xf32>
    %188 = vector.broadcast %154 : vector<1x4xf32> to vector<8x4xf32>
    %189 = arith.addf %188, %187 : vector<8x4xf32>
    %190 = vector.extract_strided_slice %4 {offsets = [0, 3, 24], sizes = [8, 1, 4], strides = [1, 1, 1]} : vector<8x8x36xf32> to vector<8x1x4xf32>
    %191 = vector.shape_cast %190 : vector<8x1x4xf32> to vector<8x4xf32>
    %192 = arith.addf %189, %191 : vector<8x4xf32>
    %193 = vector.extract_strided_slice %4 {offsets = [0, 4, 28], sizes = [8, 1, 4], strides = [1, 1, 1]} : vector<8x8x36xf32> to vector<8x1x4xf32>
    %194 = vector.shape_cast %193 : vector<8x1x4xf32> to vector<8x4xf32>
    %195 = arith.addf %192, %194 : vector<8x4xf32>
    %196 = vector.extract_strided_slice %4 {offsets = [0, 5, 32], sizes = [8, 1, 4], strides = [1, 1, 1]} : vector<8x8x36xf32> to vector<8x1x4xf32>
    %197 = vector.shape_cast %196 : vector<8x1x4xf32> to vector<8x4xf32>
    %198 = arith.addf %195, %197 : vector<8x4xf32>
    %cst_21 = arith.constant 0.000000e+00 : f32
    %199 = vector.broadcast %cst_21 : f32 to vector<8x4xf32>
    %200 = arith.maximumf %198, %199 : vector<8x4xf32>
    %201 = arith.maximumf %185, %200 : vector<8x4xf32>
    %202 = vector.extract_strided_slice %4 {offsets = [0, 3, 20], sizes = [8, 1, 4], strides = [1, 1, 1]} : vector<8x8x36xf32> to vector<8x1x4xf32>
    %203 = vector.shape_cast %202 : vector<8x1x4xf32> to vector<8x4xf32>
    %204 = vector.broadcast %154 : vector<1x4xf32> to vector<8x4xf32>
    %205 = arith.addf %204, %203 : vector<8x4xf32>
    %206 = vector.extract_strided_slice %4 {offsets = [0, 4, 24], sizes = [8, 1, 4], strides = [1, 1, 1]} : vector<8x8x36xf32> to vector<8x1x4xf32>
    %207 = vector.shape_cast %206 : vector<8x1x4xf32> to vector<8x4xf32>
    %208 = arith.addf %205, %207 : vector<8x4xf32>
    %209 = vector.extract_strided_slice %4 {offsets = [0, 5, 28], sizes = [8, 1, 4], strides = [1, 1, 1]} : vector<8x8x36xf32> to vector<8x1x4xf32>
    %210 = vector.shape_cast %209 : vector<8x1x4xf32> to vector<8x4xf32>
    %211 = arith.addf %208, %210 : vector<8x4xf32>
    %212 = vector.extract_strided_slice %4 {offsets = [0, 6, 32], sizes = [8, 1, 4], strides = [1, 1, 1]} : vector<8x8x36xf32> to vector<8x1x4xf32>
    %213 = vector.shape_cast %212 : vector<8x1x4xf32> to vector<8x4xf32>
    %214 = arith.addf %211, %213 : vector<8x4xf32>
    %cst_22 = arith.constant 0.000000e+00 : f32
    %215 = vector.broadcast %cst_22 : f32 to vector<8x4xf32>
    %216 = arith.maximumf %214, %215 : vector<8x4xf32>
    %217 = arith.maximumf %201, %216 : vector<8x4xf32>
    %218 = vector.extract_strided_slice %4 {offsets = [0, 4, 20], sizes = [8, 1, 4], strides = [1, 1, 1]} : vector<8x8x36xf32> to vector<8x1x4xf32>
    %219 = vector.shape_cast %218 : vector<8x1x4xf32> to vector<8x4xf32>
    %220 = vector.broadcast %154 : vector<1x4xf32> to vector<8x4xf32>
    %221 = arith.addf %220, %219 : vector<8x4xf32>
    %222 = vector.extract_strided_slice %4 {offsets = [0, 5, 24], sizes = [8, 1, 4], strides = [1, 1, 1]} : vector<8x8x36xf32> to vector<8x1x4xf32>
    %223 = vector.shape_cast %222 : vector<8x1x4xf32> to vector<8x4xf32>
    %224 = arith.addf %221, %223 : vector<8x4xf32>
    %225 = vector.extract_strided_slice %4 {offsets = [0, 6, 28], sizes = [8, 1, 4], strides = [1, 1, 1]} : vector<8x8x36xf32> to vector<8x1x4xf32>
    %226 = vector.shape_cast %225 : vector<8x1x4xf32> to vector<8x4xf32>
    %227 = arith.addf %224, %226 : vector<8x4xf32>
    %228 = vector.extract_strided_slice %4 {offsets = [0, 7, 32], sizes = [8, 1, 4], strides = [1, 1, 1]} : vector<8x8x36xf32> to vector<8x1x4xf32>
    %229 = vector.shape_cast %228 : vector<8x1x4xf32> to vector<8x4xf32>
    %230 = arith.addf %227, %229 : vector<8x4xf32>
    %cst_23 = arith.constant 0.000000e+00 : f32
    %231 = vector.broadcast %cst_23 : f32 to vector<8x4xf32>
    %232 = arith.maximumf %230, %231 : vector<8x4xf32>
    %233 = arith.maximumf %217, %232 : vector<8x4xf32>
    %c0_24 = arith.constant 0 : index
    %c0_25 = arith.constant 0 : index
    %234 = vector.load %arg2[%c0_24, %c0_25] : memref<8x256xf32, #tpu.memory_space<vmem>>, vector<8x256xf32>
    %c0_26 = arith.constant 0 : index
    %c0_27 = arith.constant 0 : index
    %235 = vector.load %arg5[%c0_26, %c0_27] : memref<256x128xf32, #tpu.memory_space<vmem>>, vector<256x128xf32>
    %cst_28 = arith.constant dense<0.000000e+00> : vector<8x128xf32>
    %236 = tpu.matmul %234, %235, %cst_28 {dimension_numbers = #tpu.dot_dimension_numbers<[1], [0], [0], [1], [0, 0, 1, 1], [], []>} : vector<8x256xf32>, vector<256x128xf32>, vector<8x128xf32> -> vector<8x128xf32>
    %c0_29 = arith.constant 0 : index
    %c0_30 = arith.constant 0 : index
    %237 = vector.load %arg6[%c0_29, %c0_30] : memref<1x128xf32, #tpu.memory_space<vmem>>, vector<1x128xf32>
    %238 = vector.broadcast %237 : vector<1x128xf32> to vector<8x128xf32>
    %239 = arith.addf %236, %238 : vector<8x128xf32>
    %cst_31 = arith.constant 0.000000e+00 : f32
    %240 = vector.broadcast %cst_31 : f32 to vector<8x128xf32>
    %241 = arith.maximumf %239, %240 : vector<8x128xf32>
    %242 = tpu.concatenate %75, %153, %233, %241 in 1 : vector<8x4xf32>, vector<8x4xf32>, vector<8x4xf32>, vector<8x128xf32> -> vector<8x140xf32>
    %243 = arith.truncf %242 : vector<8x140xf32> to vector<8x140xbf16>
    %c0_32 = arith.constant 0 : index
    %c0_33 = arith.constant 0 : index
    %244 = vector.load %arg7[%c0_32, %c0_33] : memref<140x512xbf16, #tpu.memory_space<vmem>>, vector<140x512xbf16>
    %cst_34 = arith.constant dense<0.000000e+00> : vector<8x512xf32>
    %245 = tpu.matmul %243, %244, %cst_34 {dimension_numbers = #tpu.dot_dimension_numbers<[1], [0], [0], [1], [0, 0, 1, 1], [], []>} : vector<8x140xbf16>, vector<140x512xbf16>, vector<8x512xf32> -> vector<8x512xf32>
    %c0_35 = arith.constant 0 : index
    %c0_36 = arith.constant 0 : index
    %246 = vector.load %arg8[%c0_35, %c0_36] : memref<1x512xf32, #tpu.memory_space<vmem>>, vector<1x512xf32>
    %247 = vector.broadcast %246 : vector<1x512xf32> to vector<8x512xf32>
    %248 = arith.addf %245, %247 : vector<8x512xf32>
    %c0_37 = arith.constant 0 : index
    %c0_38 = arith.constant 0 : index
    %249 = vector.load %arg9[%c0_37, %c0_38] : memref<8x512xf32, #tpu.memory_space<vmem>>, vector<8x512xf32>
    tpu.vector_store %arg9[%c0_37, %c0_38], %248 {strides = array<i32>} : memref<8x512xf32, #tpu.memory_space<vmem>>, vector<8x512xf32>,
    return
  }
  func.func @transform_0(%arg0: i32) -> (i32, i32, i32) {
    %c0_i32 = arith.constant 0 : i32
    %c0_i32_0 = arith.constant 0 : i32
    %c0_i32_1 = arith.constant 0 : i32
    %c0_i32_2 = arith.constant 0 : i32
    return %c0_i32, %c0_i32_0, %c0_i32_1 : i32, i32, i32
  }
  func.func @transform_1(%arg0: i32) -> (i32, i32) {
    %c0_i32 = arith.constant 0 : i32
    %c0_i32_0 = arith.constant 0 : i32
    %c0_i32_1 = arith.constant 0 : i32
    return %c0_i32, %c0_i32_0 : i32, i32
  }
  func.func @transform_2(%arg0: i32) -> (i32, i32) {
    %c0_i32 = arith.constant 0 : i32
    %c0_i32_0 = arith.constant 0 : i32
    %c0_i32_1 = arith.constant 0 : i32
    return %c0_i32, %c0_i32_0 : i32, i32
  }
  func.func @transform_3(%arg0: i32) -> (i32, i32) {
    %c0_i32 = arith.constant 0 : i32
    %c0_i32_0 = arith.constant 0 : i32
    %c0_i32_1 = arith.constant 0 : i32
    return %c0_i32, %c0_i32_0 : i32, i32
  }
  func.func @transform_4(%arg0: i32) -> (i32, i32) {
    %c0_i32 = arith.constant 0 : i32
    %c0_i32_0 = arith.constant 0 : i32
    %c0_i32_1 = arith.constant 0 : i32
    return %c0_i32, %c0_i32_0 : i32, i32
  }
  func.func @transform_5(%arg0: i32) -> (i32, i32) {
    %c0_i32 = arith.constant 0 : i32
    %c0_i32_0 = arith.constant 0 : i32
    %c0_i32_1 = arith.constant 0 : i32
    return %c0_i32, %c0_i32_0 : i32, i32
  }
  func.func @transform_6(%arg0: i32) -> (i32, i32) {
    %c0_i32 = arith.constant 0 : i32
    %c0_i32_0 = arith.constant 0 : i32
    return %c0_i32, %arg0 : i32, i32
  }
  func.func @transform_7(%arg0: i32) -> (i32, i32) {
    %c0_i32 = arith.constant 0 : i32
    %c0_i32_0 = arith.constant 0 : i32
    return %c0_i32, %arg0 : i32, i32
  }
  func.func @transform_8(%arg0: i32) -> (i32, i32) {
    %c0_i32 = arith.constant 0 : i32
    %c0_i32_0 = arith.constant 0 : i32
    return %c0_i32, %arg0 : i32, i32
  }
}

</mosaic_0001>

<llo_original>
// kernel: tpu_custom_call.1
$region0: #{tpu_custom_call.1}
  #allocation0 [shape = 'u32[]', space=smem, size = 0x4, offset = 0x4, fixed_abs, tag = 'smem constant byte address 0x4 - core index']
  #allocation1 [shape = 'u32[144,128]{1,0:T(1,128)}', space=vmem, size = 0x12000, scoped, tag = 'internal scratch']
  %s0 = inlined_call_operand.hbm [shape: f32[8,8,32], index: 0, kind: input, shape index: {}]
  %s1 = inlined_call_operand.hbm [shape: f32[8,256], index: 1, kind: input, shape index: {}]
  %s2 = inlined_call_operand.hbm [shape: f32[32,36], index: 2, kind: input, shape index: {}]
  %s3 = inlined_call_operand.vmem [shape: f32[3,4], index: 3, kind: input, shape index: {}]
  %s4 = inlined_call_operand.hbm [shape: f32[256,128], index: 4, kind: input, shape index: {}]
  %s5 = inlined_call_operand.vmem [shape: f32[1,128], index: 5, kind: input, shape index: {}]
  %s6 = inlined_call_operand.hbm [shape: bf16[140,1024], index: 6, kind: input, shape index: {}]
  %s7 = inlined_call_operand.vmem [shape: f32[1,1024], index: 7, kind: input, shape index: {}]
  %s8 = inlined_call_operand.hbm [shape: f32[8,1024], index: 8, kind: output, shape index: {}]
  %s9 = sld [smem:[#allocation0]]
  $region85: #{tpu_custom_call.1} parent=0
    _
  %s11 = ssub.s32 1, %s9
  %s12 = scalar_select 0, %s11, %s9
  $region1: #{tpu_custom_call.1} parent=0
    #allocation2 [shape = 'u8[32768]{0}', space=vmem, size = 0x8000, scoped, tag = 'input window, operand 0, single buffered']
    #allocation3 [shape = 's32[2]{0}', space=sflag, size = 0x8, scoped, tag = 'scoped memory for tpu_custom_call.1']
    #allocation4 [shape = 's32[2]{0}', space=sflag, size = 0x8, scoped, tag = 'scoped memory for tpu_custom_call.1']
    #allocation5 [shape = 'u8[8192]{0}', space=vmem, size = 0x2000, scoped, tag = 'input window, operand 1, single buffered']
    #allocation6 [shape = 's32[1]{0}', space=sflag, size = 0x4, scoped, tag = 'scoped memory for tpu_custom_call.1']
    #allocation7 [shape = 'u8[16384]{0}', space=vmem, size = 0x4000, scoped, tag = 'input window, operand 2, single buffered']
    #allocation8 [shape = 'u8[131072]{0}', space=vmem, size = 0x20000, scoped, tag = 'input window, operand 4, single buffered']
    #allocation9 [shape = 's32[1]{0}', space=sflag, size = 0x4, scoped, tag = 'scoped memory for tpu_custom_call.1']
    #allocation10 [shape = 'u8[294912]{0}', space=vmem, size = 0x48000, scoped, tag = 'input window, operand 6']
    #allocation11 [shape = 'u8[32768]{0}', space=vmem, size = 0x8000, scoped, tag = 'output window, operand 0']
    %13 = vsyncpa [#allocation3], 0
    %14 = vsyncpa [#allocation6], 0
    %15 = vsyncpa [#allocation9], 0
    %16 = vsyncpa [#allocation4], 0
    %s17 = scalar_lea.sflag [#allocation4], 1
    %18 = vsyncpa %s17, 0
    loop: start=0, step=1, limit=4
    $region2: #{tpu_custom_call.1} parent=1 // loop_pre_header
      _
    $region3: #{tpu_custom_call.1} parent=1 // loop_header
      %s20 = sphi 0, %s24
      %p21 = scmp.ge.s32.totalorder %s20, 4
      %s28 = sphi 0, %s28
      %s30 = sphi 0, %s28
      %s31 = sphi 0, %s30
      %s45 = sphi 0, %s31
      %s49 = sphi 0, %s49
      %s51 = sphi 0, %s49
      %s52 = sphi 0, %s51
      %s66 = sphi 0, %s52
      %s70 = sphi 0, %s70
      %s72 = sphi 0, %s70
      %s73 = sphi 0, %s72
      %s87 = sphi 0, %s73
      %s91 = sphi 0, %s91
      %s93 = sphi 0, %s91
      %s94 = sphi 0, %s93
      %s108 = sphi 0, %s94
      %s112 = sphi 0, %s112
      %s114 = sphi 0, %s112
      %s115 = sphi 0, %s114
      %s129 = sphi 0, %s115
      %s133 = sphi 0, %s133
      %s135 = sphi 0, %s133
      %s136 = sphi 0, %s135
      %s150 = sphi 0, %s136
      %s156 = sphi 0, %s158
      %s159 = sphi 0, %s156
      %s160 = sphi 0, %s159
      %s176 = sphi 0, %s160
      %s182 = sphi 0, %s184
      %s185 = sphi 0, %s182
      %s186 = sphi 0, %s185
      %s202 = sphi 0, %s186
      %s208 = sphi 0, %s210
      %s211 = sphi 0, %s208
      %s212 = sphi 0, %s211
      %s228 = sphi 0, %s212
    $region4: #{tpu_custom_call.1} parent=1 // loop_header_branch
      %23 = sbr.rel (%p21) target = $region8
    $region5: #{tpu_custom_call.1} parent=1 // loop_body
      %s25 = ssub.s32 %s20, 1
      %s26 = ssub.s32 %s20, 2
      %s27 = sadd.s32 %s20, 1
      %s29 = sadd.s32 %s28, 1
      %p32 = scmp.eq.s32.totalorder %s20, 1
      %p33 = scmp.ne.s32.totalorder %s28, %s30
      %p34 = scmp.eq.s32.totalorder %s20, 0
      %p35 = por %p33, %p34
      %p36 = scmp.ne.s32.totalorder %s28, %s30
      %p37 = scmp.eq.s32.totalorder %s25, 1
      %p38 = por %p36, %p37
      %p39 = scmp.ne.s32.totalorder %s30, %s31
      %p40 = scmp.eq.s32.totalorder %s25, 0
      %p41 = por %p39, %p40
      %p42 = scmp.ne.s32.totalorder %s30, %s31
      %p43 = scmp.eq.s32.totalorder %s26, 1
      %p44 = por %p42, %p43
      %p46 = scmp.ne.s32.totalorder %s31, %s45
      %p47 = scmp.eq.s32.totalorder %s26, 0
      %p48 = por %p46, %p47
      %s50 = sadd.s32 %s49, 1
      %p53 = scmp.eq.s32.totalorder %s20, 1
      %p54 = scmp.ne.s32.totalorder %s49, %s51
      %p55 = scmp.eq.s32.totalorder %s20, 0
      %p56 = por %p54, %p55
      %p57 = scmp.ne.s32.totalorder %s49, %s51
      %p58 = scmp.eq.s32.totalorder %s25, 1
      %p59 = por %p57, %p58
      %p60 = scmp.ne.s32.totalorder %s51, %s52
      %p61 = scmp.eq.s32.totalorder %s25, 0
      %p62 = por %p60, %p61
      %p63 = scmp.ne.s32.totalorder %s51, %s52
      %p64 = scmp.eq.s32.totalorder %s26, 1
      %p65 = por %p63, %p64
      %p67 = scmp.ne.s32.totalorder %s52, %s66
      %p68 = scmp.eq.s32.totalorder %s26, 0
      %p69 = por %p67, %p68
      %s71 = sadd.s32 %s70, 1
      %p74 = scmp.eq.s32.totalorder %s20, 1
      %p75 = scmp.ne.s32.totalorder %s70, %s72
      %p76 = scmp.eq.s32.totalorder %s20, 0
      %p77 = por %p75, %p76
      %p78 = scmp.ne.s32.totalorder %s70, %s72
      %p79 = scmp.eq.s32.totalorder %s25, 1
      %p80 = por %p78, %p79
      %p81 = scmp.ne.s32.totalorder %s72, %s73
      %p82 = scmp.eq.s32.totalorder %s25, 0
      %p83 = por %p81, %p82
      %p84 = scmp.ne.s32.totalorder %s72, %s73
      %p85 = scmp.eq.s32.totalorder %s26, 1
      %p86 = por %p84, %p85
      %p88 = scmp.ne.s32.totalorder %s73, %s87
      %p89 = scmp.eq.s32.totalorder %s26, 0
      %p90 = por %p88, %p89
      %s92 = sadd.s32 %s91, 1
      %p95 = scmp.eq.s32.totalorder %s20, 1
      %p96 = scmp.ne.s32.totalorder %s91, %s93
      %p97 = scmp.eq.s32.totalorder %s20, 0
      %p98 = por %p96, %p97
      %p99 = scmp.ne.s32.totalorder %s91, %s93
      %p100 = scmp.eq.s32.totalorder %s25, 1
      %p101 = por %p99, %p100
      %p102 = scmp.ne.s32.totalorder %s93, %s94
      %p103 = scmp.eq.s32.totalorder %s25, 0
      %p104 = por %p102, %p103
      %p105 = scmp.ne.s32.totalorder %s93, %s94
      %p106 = scmp.eq.s32.totalorder %s26, 1
      %p107 = por %p105, %p106
      %p109 = scmp.ne.s32.totalorder %s94, %s108
      %p110 = scmp.eq.s32.totalorder %s26, 0
      %p111 = por %p109, %p110
      %s113 = sadd.s32 %s112, 1
      %p116 = scmp.eq.s32.totalorder %s20, 1
      %p117 = scmp.ne.s32.totalorder %s112, %s114
      %p118 = scmp.eq.s32.totalorder %s20, 0
      %p119 = por %p117, %p118
      %p120 = scmp.ne.s32.totalorder %s112, %s114
      %p121 = scmp.eq.s32.totalorder %s25, 1
      %p122 = por %p120, %p121
      %p123 = scmp.ne.s32.totalorder %s114, %s115
      %p124 = scmp.eq.s32.totalorder %s25, 0
      %p125 = por %p123, %p124
      %p126 = scmp.ne.s32.totalorder %s114, %s115
      %p127 = scmp.eq.s32.totalorder %s26, 1
      %p128 = por %p126, %p127
      %p130 = scmp.ne.s32.totalorder %s115, %s129
      %p131 = scmp.eq.s32.totalorder %s26, 0
      %p132 = por %p130, %p131
      %s134 = sadd.s32 %s133, 1
      %p137 = scmp.eq.s32.totalorder %s20, 1
      %p138 = scmp.ne.s32.totalorder %s133, %s135
      %p139 = scmp.eq.s32.totalorder %s20, 0
      %p140 = por %p138, %p139
      %p141 = scmp.ne.s32.totalorder %s133, %s135
      %p142 = scmp.eq.s32.totalorder %s25, 1
      %p143 = por %p141, %p142
      %p144 = scmp.ne.s32.totalorder %s135, %s136
      %p145 = scmp.eq.s32.totalorder %s25, 0
      %p146 = por %p144, %p145
      %p147 = scmp.ne.s32.totalorder %s135, %s136
      %p148 = scmp.eq.s32.totalorder %s26, 1
      %p149 = por %p147, %p148
      %p151 = scmp.ne.s32.totalorder %s136, %s150
      %p152 = scmp.eq.s32.totalorder %s26, 0
      %p153 = por %p151, %p152
      %s154 = ssub.s32 %s20, %s27
      %p155 = scmp.eq.s32.totalorder %s154, 0
      %s157 = sadd.s32 %s156, 1
      %s158 = scalar_select %p155, %s156, %s157
      %p161 = pneg %p155
      %p162 = scmp.eq.s32.totalorder %s20, 1
      %p163 = por %p161, %p162
      %p164 = scmp.ne.s32.totalorder %s156, %s159
      %p165 = scmp.eq.s32.totalorder %s20, 0
      %p166 = por %p164, %p165
      %p167 = scmp.ne.s32.totalorder %s156, %s159
      %p168 = scmp.eq.s32.totalorder %s25, 1
      %p169 = por %p167, %p168
      %p170 = scmp.ne.s32.totalorder %s159, %s160
      %p171 = scmp.eq.s32.totalorder %s25, 0
      %p172 = por %p170, %p171
      %p173 = scmp.ne.s32.totalorder %s159, %s160
      %p174 = scmp.eq.s32.totalorder %s26, 1
      %p175 = por %p173, %p174
      %p177 = scmp.ne.s32.totalorder %s160, %s176
      %p178 = scmp.eq.s32.totalorder %s26, 0
      %p179 = por %p177, %p178
      %s180 = ssub.s32 %s20, %s27
      %p181 = scmp.eq.s32.totalorder %s180, 0
      %s183 = sadd.s32 %s182, 1
      %s184 = scalar_select %p181, %s182, %s183
      %p187 = pneg %p181
      %p188 = scmp.eq.s32.totalorder %s20, 1
      %p189 = por %p187, %p188
      %p190 = scmp.ne.s32.totalorder %s182, %s185
      %p191 = scmp.eq.s32.totalorder %s20, 0
      %p192 = por %p190, %p191
      %p193 = scmp.ne.s32.totalorder %s182, %s185
      %p194 = scmp.eq.s32.totalorder %s25, 1
      %p195 = por %p193, %p194
      %p196 = scmp.ne.s32.totalorder %s185, %s186
      %p197 = scmp.eq.s32.totalorder %s25, 0
      %p198 = por %p196, %p197
      %p199 = scmp.ne.s32.totalorder %s185, %s186
      %p200 = scmp.eq.s32.totalorder %s26, 1
      %p201 = por %p199, %p200
      %p203 = scmp.ne.s32.totalorder %s186, %s202
      %p204 = scmp.eq.s32.totalorder %s26, 0
      %p205 = por %p203, %p204
      %s206 = ssub.s32 %s20, %s27
      %p207 = scmp.eq.s32.totalorder %s206, 0
      %s209 = sadd.s32 %s208, 1
      %s210 = scalar_select %p207, %s208, %s209
      %p213 = pneg %p207
      %p214 = scmp.eq.s32.totalorder %s20, 1
      %p215 = por %p213, %p214
      %p216 = scmp.ne.s32.totalorder %s208, %s211
      %p217 = scmp.eq.s32.totalorder %s20, 0
      %p218 = por %p216, %p217
      %p219 = scmp.ne.s32.totalorder %s208, %s211
      %p220 = scmp.eq.s32.totalorder %s25, 1
      %p221 = por %p219, %p220
      %p222 = scmp.ne.s32.totalorder %s211, %s212
      %p223 = scmp.eq.s32.totalorder %s25, 0
      %p224 = por %p222, %p223
      %p225 = scmp.ne.s32.totalorder %s211, %s212
      %p226 = scmp.eq.s32.totalorder %s26, 1
      %p227 = por %p225, %p226
      %p229 = scmp.ne.s32.totalorder %s212, %s228
      %p230 = scmp.eq.s32.totalorder %s26, 0
      %p231 = por %p229, %p230
      %p232 = scmp.le.s32.totalorder 1, %s20
      %p233 = scmp.lt.s32.totalorder %s20, 3
      %p234 = pnand %p232, %p233
      %p235 = pneg %p234
      // Predicated region
      $region9: #{tpu_custom_call.1} parent=5 // pred_check
        _
      $region10: #{tpu_custom_call.1} parent=5 // pred_check_branch
        %237 = sbr.rel (%p234) target = $region12
      $region11: #{tpu_custom_call.1} parent=5 // pred_region
        %s238 = ssub.s32 %s20, 1
        // Predicated region
        $region13: #{tpu_custom_call.1} parent=11 // pred_check
          %p239 = pneg %p41
        $region14: #{tpu_custom_call.1} parent=11 // pred_check_branch
          %241 = sbr.rel (%p239) target = $region16
        $region15: #{tpu_custom_call.1} parent=11 // pred_region
          %s243 = ssub.s32 1024, 1024
          %244 = vsyncadd [#allocation3], %s243
          %s245 = sshll.u32 [#allocation2], 4
          %s246 = int_to_ptr.vmem [resolvable:$true] %s245
          %251 = dma.hbm_to_vmem [thread:$0]  %s0, 1024, %s246, [#allocation3], 128, 128, 8
        $region16: #{tpu_custom_call.1} parent=11 // pred_fallthru
          _
        // Predicated region
        $region17: #{tpu_custom_call.1} parent=11 // pred_check
          %p252 = pneg %p62
        $region18: #{tpu_custom_call.1} parent=11 // pred_check_branch
          %254 = sbr.rel (%p252) target = $region20
        $region19: #{tpu_custom_call.1} parent=11 // pred_region
          %s256 = ssub.s32 256, 256
          %257 = vsyncadd [#allocation6], %s256
          %s259 = sshll.u32 [#allocation5], 4
          %s260 = int_to_ptr.vmem [resolvable:$true] %s259
          %262 = dma.hbm_to_vmem [thread:$0]  %s1, 256, %s260, [#allocation6]
        $region20: #{tpu_custom_call.1} parent=11 // pred_fallthru
          _
        // Predicated region
        $region21: #{tpu_custom_call.1} parent=11 // pred_check
          %p263 = pneg %p83
        $region22: #{tpu_custom_call.1} parent=11 // pred_check_branch
          %265 = sbr.rel (%p263) target = $region24
        $region23: #{tpu_custom_call.1} parent=11 // pred_region
          %s267 = ssub.s32 512, 512
          %268 = vsyncadd [#allocation6], %s267
          %s269 = sshll.u32 [#allocation7], 4
          %s270 = int_to_ptr.vmem [resolvable:$true] %s269
          %275 = dma.hbm_to_vmem [thread:$0]  %s2, 512, %s270, [#allocation6], 128, 128, 8
        $region24: #{tpu_custom_call.1} parent=11 // pred_fallthru
          _
        // Predicated region
        $region25: #{tpu_custom_call.1} parent=11 // pred_check
          %p276 = pneg %p104
        $region26: #{tpu_custom_call.1} parent=11 // pred_check_branch
          %278 = sbr.rel (%p276) target = $region28
        $region27: #{tpu_custom_call.1} parent=11 // pred_region
          _
        $region28: #{tpu_custom_call.1} parent=11 // pred_fallthru
          _
        // Predicated region
        $region29: #{tpu_custom_call.1} parent=11 // pred_check
          %p279 = pneg %p125
        $region30: #{tpu_custom_call.1} parent=11 // pred_check_branch
          %281 = sbr.rel (%p279) target = $region32
        $region31: #{tpu_custom_call.1} parent=11 // pred_region
          %s283 = ssub.s32 4096, 4096
          %284 = vsyncadd [#allocation9], %s283
          %s285 = sshll.u32 [#allocation8], 4
          %s286 = int_to_ptr.vmem [resolvable:$true] %s285
          %291 = dma.hbm_to_vmem [thread:$0]  %s4, 4096, %s286, [#allocation9], 128, 128, 8
        $region32: #{tpu_custom_call.1} parent=11 // pred_fallthru
          _
        // Predicated region
        $region33: #{tpu_custom_call.1} parent=11 // pred_check
          %p292 = pneg %p146
        $region34: #{tpu_custom_call.1} parent=11 // pred_check_branch
          %294 = sbr.rel (%p292) target = $region36
        $region35: #{tpu_custom_call.1} parent=11 // pred_region
          _
        $region36: #{tpu_custom_call.1} parent=11 // pred_fallthru
          _
      $region12: #{tpu_custom_call.1} parent=5 // pred_fallthru
        _
      %p295 = scmp.lt.s32.totalorder %s20, 2
      // Predicated region
      $region37: #{tpu_custom_call.1} parent=5 // pred_check
        %p296 = pneg %p295
      $region38: #{tpu_custom_call.1} parent=5 // pred_check_branch
        %298 = sbr.rel (%p296) target = $region40
      $region39: #{tpu_custom_call.1} parent=5 // pred_region
        // Predicated region
        $region41: #{tpu_custom_call.1} parent=39 // pred_check
          %p299 = pneg %p166
        $region42: #{tpu_custom_call.1} parent=39 // pred_check_branch
          %301 = sbr.rel (%p299) target = $region44
        $region43: #{tpu_custom_call.1} parent=39 // pred_region
          %s302 = sand.u32 %s20, 1
          %s303 = scalar_lea.sflag [#allocation3], %s302
          %s304 = sand.u32 %s156, 1
          %s305 = smul.addr %s304, 288
          %s306 = scalar_lea.vmem [#allocation10], %s305
          %s307 = smul.u32 4, %s20
          %s309 = ssub.s32 4608, 4608
          %310 = vsyncadd %s303, %s309
          %s311 = smul.addr %s307, 64
          %s312 = scalar_lea.hbm %s6, %s311
          %s313 = sshll.u32 %s306, 4
          %s314 = int_to_ptr.vmem [resolvable:$true] %s313
          %319 = dma.hbm_to_vmem [thread:$0]  %s312, 4608, %s314, %s303, 512, 256, 16
        $region44: #{tpu_custom_call.1} parent=39 // pred_fallthru
          _
        // Predicated region
        $region45: #{tpu_custom_call.1} parent=39 // pred_check
          %p320 = pneg %p192
        $region46: #{tpu_custom_call.1} parent=39 // pred_check_branch
          %322 = sbr.rel (%p320) target = $region48
        $region47: #{tpu_custom_call.1} parent=39 // pred_region
          %s323 = smul.u32 4, %s20
          %p324 = scmp.lt.s32.totalorder %s323, 7
          %s325 = scalar_select %p324, %s323, 7
          %s326 = scalar_lea.vmem %s7, %s325
          %s327 = smul.u32 4, %s20
        $region48: #{tpu_custom_call.1} parent=39 // pred_fallthru
          _
      $region40: #{tpu_custom_call.1} parent=5 // pred_fallthru
        _
      %p328 = scmp.le.s32.totalorder 1, %s20
      %p329 = scmp.lt.s32.totalorder %s20, 3
      %p330 = pnand %p328, %p329
      %p331 = pneg %p330
      // Predicated region
      $region49: #{tpu_custom_call.1} parent=5 // pred_check
        _
      $region50: #{tpu_custom_call.1} parent=5 // pred_check_branch
        %333 = sbr.rel (%p330) target = $region52
      $region51: #{tpu_custom_call.1} parent=5 // pred_region
        %s334 = ssub.s32 %s20, 1
        // Predicated region
        $region53: #{tpu_custom_call.1} parent=51 // pred_check
          %p335 = pneg %p41
        $region54: #{tpu_custom_call.1} parent=51 // pred_check_branch
          %337 = sbr.rel (%p335) target = $region56
        $region55: #{tpu_custom_call.1} parent=51 // pred_region
          %338 = dma.done [#allocation3], 1024
        $region56: #{tpu_custom_call.1} parent=51 // pred_fallthru
          _
        // Predicated region
        $region57: #{tpu_custom_call.1} parent=51 // pred_check
          %p339 = pneg %p62
        $region58: #{tpu_custom_call.1} parent=51 // pred_check_branch
          %341 = sbr.rel (%p339) target = $region60
        $region59: #{tpu_custom_call.1} parent=51 // pred_region
          %342 = dma.done [#allocation6], 256
        $region60: #{tpu_custom_call.1} parent=51 // pred_fallthru
          _
        // Predicated region
        $region61: #{tpu_custom_call.1} parent=51 // pred_check
          %p343 = pneg %p83
        $region62: #{tpu_custom_call.1} parent=51 // pred_check_branch
          %345 = sbr.rel (%p343) target = $region64
        $region63: #{tpu_custom_call.1} parent=51 // pred_region
          %346 = dma.done [#allocation6], 512
        $region64: #{tpu_custom_call.1} parent=51 // pred_fallthru
          _
        // Predicated region
        $region65: #{tpu_custom_call.1} parent=51 // pred_check
          %p347 = pneg %p125
        $region66: #{tpu_custom_call.1} parent=51 // pred_check_branch
          %349 = sbr.rel (%p347) target = $region68
        $region67: #{tpu_custom_call.1} parent=51 // pred_region
          %350 = dma.done [#allocation9], 4096
        $region68: #{tpu_custom_call.1} parent=51 // pred_fallthru
          _
        %s351 = sand.u32 %s25, 1
        %s352 = scalar_lea.sflag [#allocation3], %s351
        %s353 = sand.u32 %s159, 1
        %s354 = smul.addr %s353, 288
        %s355 = scalar_lea.vmem [#allocation10], %s354
        // Predicated region
        $region69: #{tpu_custom_call.1} parent=51 // pred_check
          %p356 = pneg %p172
        $region70: #{tpu_custom_call.1} parent=51 // pred_check_branch
          %358 = sbr.rel (%p356) target = $region72
        $region71: #{tpu_custom_call.1} parent=51 // pred_region
          %359 = dma.done %s352, 4608
        $region72: #{tpu_custom_call.1} parent=51 // pred_fallthru
          _
        %p360 = pneg %p41
        %p361 = pneg %p38
        %p362 = pneg %p62
        %p363 = pneg %p59
        %p364 = pneg %p83
        %p365 = pneg %p80
        %p366 = pneg %p104
        %p367 = pneg %p101
        %p368 = pneg %p125
        %p369 = pneg %p122
        %p370 = pneg %p146
        %p371 = pneg %p143
        %s372 = sand.u32 %s25, 1
        %s373 = scalar_lea.sflag [#allocation3], %s372
        %s374 = sand.u32 %s159, 1
        %s375 = smul.addr %s374, 288
        %s376 = scalar_lea.vmem [#allocation10], %s375
        %p377 = pneg %p172
        %p378 = pneg %p169
        %s379 = smul.u32 4, %s25
        %p380 = scmp.lt.s32.totalorder %s379, 7
        %s381 = scalar_select %p380, %s379, 7
        %s382 = scalar_lea.vmem %s7, %s381
        %p383 = pneg %p198
        %p384 = pneg %p195
        %p385 = pneg %p224
        %p386 = pneg %p221
        %s387 = sand.u32 %s211, 1
        %s388 = scalar_lea.sflag [#allocation4], %s387
        %s389 = sand.u32 %s211, 1
        %s390 = smul.addr %s389, 32
        %s391 = scalar_lea.vmem [#allocation11], %s390
        %s392 = smul.u32 4, %s25
        %s393 = smul.u32 4, %s25
        %p394 = scmp.lt.s32.totalorder %s393, 7
        %s395 = scalar_select %p394, %s393, 7
        %s396 = scalar_lea.vmem %s7, %s395
        %s397 = smul.u32 4, %s25
        %s398 = smul.u32 4, %s25
        %v400 = vld [vmem:[#allocation2] sm:$0xff]
        %v401 = vld [vmem:[#allocation2 + $0x8] sm:$0xff]
        %v402 = vld [vmem:[#allocation2 + $0x10] sm:$0xff]
        %v403 = vld [vmem:[#allocation2 + $0x18] sm:$0xff]
        %v404 = vld [vmem:[#allocation2 + $0x20] sm:$0xff]
        %v405 = vld [vmem:[#allocation2 + $0x28] sm:$0xff]
        %v406 = vld [vmem:[#allocation2 + $0x30] sm:$0xff]
        %v407 = vld [vmem:[#allocation2 + $0x38] sm:$0xff]
        %v408 = vld [vmem:[#allocation7] sm:$0xff]
        %v409 = vld [vmem:[#allocation7 + $0x8] sm:$0xff]
        %v410 = vld [vmem:[#allocation7 + $0x10] sm:$0xff]
        %v411 = vld [vmem:[#allocation7 + $0x18] sm:$0xff]
        %vm412 = vcmask 261120
        %v414 = vsel %vm412, %v400, 0
        %v417 = vsel %vm412, %v401, 0
        %v420 = vsel %vm412, %v402, 0
        %v423 = vsel %vm412, %v403, 0
        %v426 = vsel %vm412, %v404, 0
        %v429 = vsel %vm412, %v405, 0
        %v432 = vsel %vm412, %v406, 0
        %v435 = vsel %vm412, %v407, 0
        %437 = vmatprep.subr.mxu0 0.0
        %438 = vmatpush1.msra.mxu0 %v408
        %439 = vmatprep.subr.mxu0 0.0
        %440 = vmatpush1.msra.mxu0 %v409
        %441 = vmatprep.subr.mxu0 0.0
        %442 = vmatpush1.msra.mxu0 %v410
        %443 = vmatprep.subr.mxu0 0.0
        %444 = vmatpush1.msra.mxu0 %v411
        %445 = vmatprep.subr.mxu0 0.0
        %446 = vmatpush1.msra.mxu0 0.0
        %447 = vmatprep.subr.mxu0 0.0
        %448 = vmatpush1.msra.mxu0 0.0
        %449 = vmatprep.subr.mxu0 0.0
        %450 = vmatpush1.msra.mxu0 0.0
        %451 = vmatprep.subr.mxu0 0.0
        %452 = vmatpush1.msra.mxu0 0.0
        %453 = vmatprep.subr.mxu0 0.0
        %454 = vmatpush1.msra.mxu0 0.0
        %455 = vmatprep.subr.mxu0 0.0
        %456 = vmatpush1.msra.mxu0 0.0
        %457 = vmatprep.subr.mxu0 0.0
        %458 = vmatpush1.msra.mxu0 0.0
        %459 = vmatprep.subr.mxu0 0.0
        %460 = vmatpush1.msra.mxu0 0.0
        %461 = vmatprep.subr.mxu0 0.0
        %462 = vmatpush1.msra.mxu0 0.0
        %463 = vmatprep.subr.mxu0 0.0
        %464 = vmatpush1.msra.mxu0 0.0
        %465 = vmatprep.subr.mxu0 0.0
        %466 = vmatpush1.msra.mxu0 0.0
        %467 = vmatprep.subr.mxu0 0.0
        %468 = vmatpush1.msra.mxu0 0.0
        %469 = vmatprep.subr.mxu0 0.0
        %470 = vmatpush1.msra.mxu0 0.0
        %471 = vmatprep.subr.mxu0 0.0
        %472 = vmatpush1.msra.mxu0 0.0
        %473 = vmatprep.subr.mxu0 0.0
        %474 = vmatpush1.msra.mxu0 0.0
        %475 = vmatprep.subr.mxu0 0.0
        %476 = vmatpush1.msra.mxu0 0.0
        %477 = vmatprep.subr.mxu0 0.0
        %478 = vmatpush1.msra.mxu0 0.0
        %479 = vmatprep.subr.mxu0 0.0
        %480 = vmatpush1.msra.mxu0 0.0
        %481 = vmatprep.subr.mxu0 0.0
        %482 = vmatpush1.msra.mxu0 0.0
        %483 = vmatprep.subr.mxu0 0.0
        %484 = vmatpush1.msra.mxu0 0.0
        %485 = vmatprep.subr.mxu0 0.0
        %486 = vmatpush1.msra.mxu0 0.0
        %487 = vmatprep.subr.mxu0 0.0
        %488 = vmatpush1.msra.mxu0 0.0
        %489 = vmatprep.subr.mxu0 0.0
        %490 = vmatpush1.msra.mxu0 0.0
        %491 = vmatprep.subr.mxu0 0.0
        %492 = vmatpush1.msra.mxu0 0.0
        %493 = vmatprep.subr.mxu0 0.0
        %494 = vmatpush1.msra.mxu0 0.0
        %495 = vmatprep.subr.mxu0 0.0
        %496 = vmatpush1.msra.mxu0 0.0
        %497 = vmatprep.subr.mxu0 0.0
        %498 = vmatpush1.msra.mxu0 0.0
        %499 = vmatprep.subr.mxu0 0.0
        %500 = vmatpush1.msra.mxu0 0.0
        %501 = vmatprep.mubr.f32.mxu0 0.0
        %502 = vmatmul.mubr.f32.gmra.mrb[0].mxu0 %v414
        %v503 = vpop.f32.mrb[0].mxu0
        %v504 = vadd.f32 0.0, %v503
        %v505 = vpop.f32.mrb[0].mxu0
        %506 = vmatprep.mubr.f32.mxu0 0.0
        %507 = vmatmul.mubr.f32.gmra.mrb[0].mxu0 %v417
        %v508 = vpop.f32.mrb[0].mxu0
        %v509 = vadd.f32 0.0, %v508
        %v510 = vpop.f32.mrb[0].mxu0
        %511 = vmatprep.mubr.f32.mxu0 0.0
        %512 = vmatmul.mubr.f32.gmra.mrb[0].mxu0 %v420
        %v513 = vpop.f32.mrb[0].mxu0
        %v514 = vadd.f32 0.0, %v513
        %v515 = vpop.f32.mrb[0].mxu0
        %516 = vmatprep.mubr.f32.mxu0 0.0
        %517 = vmatmul.mubr.f32.gmra.mrb[0].mxu0 %v423
        %v518 = vpop.f32.mrb[0].mxu0
        %v519 = vadd.f32 0.0, %v518
        %v520 = vpop.f32.mrb[0].mxu0
        %521 = vmatprep.mubr.f32.mxu0 0.0
        %522 = vmatmul.mubr.f32.gmra.mrb[0].mxu0 %v426
        %v523 = vpop.f32.mrb[0].mxu0
        %v524 = vadd.f32 0.0, %v523
        %v525 = vpop.f32.mrb[0].mxu0
        %526 = vmatprep.mubr.f32.mxu0 0.0
        %527 = vmatmul.mubr.f32.gmra.mrb[0].mxu0 %v429
        %v528 = vpop.f32.mrb[0].mxu0
        %v529 = vadd.f32 0.0, %v528
        %v530 = vpop.f32.mrb[0].mxu0
        %531 = vmatprep.mubr.f32.mxu0 0.0
        %532 = vmatmul.mubr.f32.gmra.mrb[0].mxu0 %v432
        %v533 = vpop.f32.mrb[0].mxu0
        %v534 = vadd.f32 0.0, %v533
        %v535 = vpop.f32.mrb[0].mxu0
        %536 = vmatprep.mubr.f32.mxu0 0.0
        %537 = vmatmul.mubr.f32.gmra.mrb[0].mxu0 %v435
        %v538 = vpop.f32.mrb[0].mxu0
        %v539 = vadd.f32 0.0, %v538
        %v540 = vpop.f32.mrb[0].mxu0
        %541 = vdwg.mxu0
        %v542 = vld [vmem:[%s3] sm:$0x7]
        %v543 = vlaneseq
        %v544 = vshrl.u32 %v543, 7
        %v545 = vsub.s32 0, %v544
        %v546 = vrot.slane %v542, %v545
        %v555 = vrot.slane %v509, 7
        %vm556 = vcmask 1041409
        %v557 = vsel %vm556, %v555, %v504
        %v558 = vrot.slane %v514, 6
        %vm559 = vcmask 1042434
        %v560 = vsel %vm559, %v558, %v557
        %v561 = vrot.slane %v519, 5
        %vm562 = vcmask 1043459
        %v563 = vsel %vm562, %v561, %v560
        %v564 = vrot.slane %v524, 4
        %vm565 = vcmask 1044484
        %v566 = vsel %vm565, %v564, %v563
        %v567 = vrot.slane %v529, 3
        %vm568 = vcmask 1045509
        %v569 = vsel %vm568, %v567, %v566
        %v570 = vrot.slane %v534, 2
        %vm571 = vcmask 1046534
        %v572 = vsel %vm571, %v570, %v569
        %v573 = vrot.slane %v539, 1
        %vm574 = vcmask 1047559
        %v575 = vsel %vm574, %v573, %v572
        %v577 = vadd.f32 %v546, %v575
        %v578 = vrot.slane %v504, 1
        %v579 = vsel %vm556, %v509, %v578
        %v580 = vrot.slane %v514, 7
        %v581 = vsel %vm559, %v580, %v579
        %v582 = vrot.slane %v519, 6
        %v583 = vsel %vm562, %v582, %v581
        %v584 = vrot.slane %v524, 5
        %v585 = vsel %vm565, %v584, %v583
        %v586 = vrot.slane %v529, 4
        %v587 = vsel %vm568, %v586, %v585
        %v588 = vrot.slane %v534, 3
        %v589 = vsel %vm571, %v588, %v587
        %v590 = vrot.slane %v539, 2
        %v591 = vsel %vm574, %v590, %v589
        %592 = vrot.lane.b32.xlu0 %v591, 124
        %v593 = vpop.permute.xlu0 %592
        %v595 = vadd.f32 %v577, %v593
        %v596 = vmax.f32 %v595, 0.0
        %v598 = vadd.f32 %v546, %v591
        %v599 = vrot.slane %v504, 2
        %v600 = vrot.slane %v509, 1
        %v601 = vsel %vm556, %v600, %v599
        %v602 = vsel %vm559, %v514, %v601
        %v603 = vrot.slane %v519, 7
        %v604 = vsel %vm562, %v603, %v602
        %v605 = vrot.slane %v524, 6
        %v606 = vsel %vm565, %v605, %v604
        %v607 = vrot.slane %v529, 5
        %v608 = vsel %vm568, %v607, %v606
        %v609 = vrot.slane %v534, 4
        %v610 = vsel %vm571, %v609, %v608
        %v611 = vrot.slane %v539, 3
        %v612 = vsel %vm574, %v611, %v610
        %613 = vrot.lane.b32.xlu0 %v612, 124
        %v614 = vpop.permute.xlu0 %613
        %v616 = vadd.f32 %v598, %v614
        %v617 = vmax.f32 %v616, 0.0
        %v618 = vmax.f32 %v596, %v617
        %v620 = vadd.f32 %v546, %v612
        %v621 = vrot.slane %v504, 3
        %v622 = vrot.slane %v509, 2
        %v623 = vsel %vm556, %v622, %v621
        %v624 = vrot.slane %v514, 1
        %v625 = vsel %vm559, %v624, %v623
        %v626 = vsel %vm562, %v519, %v625
        %v627 = vrot.slane %v524, 7
        %v628 = vsel %vm565, %v627, %v626
        %v629 = vrot.slane %v529, 6
        %v630 = vsel %vm568, %v629, %v628
        %v631 = vrot.slane %v534, 5
        %v632 = vsel %vm571, %v631, %v630
        %v633 = vrot.slane %v539, 4
        %v634 = vsel %vm574, %v633, %v632
        %635 = vrot.lane.b32.xlu0 %v634, 124
        %v636 = vpop.permute.xlu0 %635
        %v638 = vadd.f32 %v620, %v636
        %v639 = vmax.f32 %v638, 0.0
        %v640 = vmax.f32 %v618, %v639
        %v642 = vadd.f32 %v546, %v634
        %v643 = vrot.slane %v504, 4
        %v644 = vrot.slane %v509, 3
        %v645 = vsel %vm556, %v644, %v643
        %v646 = vrot.slane %v514, 2
        %v647 = vsel %vm559, %v646, %v645
        %v648 = vrot.slane %v519, 1
        %v649 = vsel %vm562, %v648, %v647
        %v650 = vsel %vm565, %v524, %v649
        %v651 = vrot.slane %v529, 7
        %v652 = vsel %vm568, %v651, %v650
        %v653 = vrot.slane %v534, 6
        %v654 = vsel %vm571, %v653, %v652
        %v655 = vrot.slane %v539, 5
        %v656 = vsel %vm574, %v655, %v654
        %657 = vrot.lane.b32.xlu0 %v656, 124
        %v658 = vpop.permute.xlu0 %657
        %v660 = vadd.f32 %v642, %v658
        %v661 = vmax.f32 %v660, 0.0
        %v662 = vmax.f32 %v640, %v661
        %v664 = vadd.f32 %v546, %v656
        %v665 = vrot.slane %v504, 5
        %v666 = vrot.slane %v509, 4
        %v667 = vsel %vm556, %v666, %v665
        %v668 = vrot.slane %v514, 3
        %v669 = vsel %vm559, %v668, %v667
        %v670 = vrot.slane %v519, 2
        %v671 = vsel %vm562, %v670, %v669
        %v672 = vrot.slane %v524, 1
        %v673 = vsel %vm565, %v672, %v671
        %v674 = vsel %vm568, %v529, %v673
        %v675 = vrot.slane %v534, 7
        %v676 = vsel %vm571, %v675, %v674
        %v677 = vrot.slane %v539, 6
        %v678 = vsel %vm574, %v677, %v676
        %679 = vrot.lane.b32.xlu0 %v678, 124
        %v680 = vpop.permute.xlu0 %679
        %v682 = vadd.f32 %v664, %v680
        %v683 = vmax.f32 %v682, 0.0
        %v684 = vmax.f32 %v662, %v683
        %v686 = vadd.f32 %v546, %v678
        %v687 = vrot.slane %v504, 6
        %v688 = vrot.slane %v509, 5
        %v689 = vsel %vm556, %v688, %v687
        %v690 = vrot.slane %v514, 4
        %v691 = vsel %vm559, %v690, %v689
        %v692 = vrot.slane %v519, 3
        %v693 = vsel %vm562, %v692, %v691
        %v694 = vrot.slane %v524, 2
        %v695 = vsel %vm565, %v694, %v693
        %v696 = vrot.slane %v529, 1
        %v697 = vsel %vm568, %v696, %v695
        %v698 = vsel %vm571, %v534, %v697
        %v699 = vrot.slane %v539, 7
        %v700 = vsel %vm574, %v699, %v698
        %701 = vrot.lane.b32.xlu0 %v700, 124
        %v702 = vpop.permute.xlu0 %701
        %v704 = vadd.f32 %v686, %v702
        %v705 = vmax.f32 %v704, 0.0
        %v706 = vmax.f32 %v684, %v705
        %v708 = vadd.f32 %v546, %v700
        %v709 = vrot.slane %v504, 7
        %v710 = vrot.slane %v509, 6
        %v711 = vsel %vm556, %v710, %v709
        %v712 = vrot.slane %v514, 5
        %v713 = vsel %vm559, %v712, %v711
        %v714 = vrot.slane %v519, 4
        %v715 = vsel %vm562, %v714, %v713
        %v716 = vrot.slane %v524, 3
        %v717 = vsel %vm565, %v716, %v715
        %v718 = vrot.slane %v529, 2
        %v719 = vsel %vm568, %v718, %v717
        %v720 = vrot.slane %v534, 1
        %v721 = vsel %vm571, %v720, %v719
        %v722 = vsel %vm574, %v539, %v721
        %723 = vrot.lane.b32.xlu0 %v722, 124
        %v724 = vpop.permute.xlu0 %723
        %v726 = vadd.f32 %v708, %v724
        %v727 = vmax.f32 %v726, 0.0
        %v728 = vmax.f32 %v706, %v727
        %v729 = vlaneseq
        %v730 = vshrl.u32 %v729, 7
        %v731 = vsub.s32 1, %v730
        %v732 = vrot.slane %v542, %v731
        %733 = vrot.lane.b32.xlu0 %v575, 120
        %v734 = vpop.permute.xlu0 %733
        %v736 = vadd.f32 %v732, %v734
        %737 = vrot.lane.b32.xlu0 %v591, 116
        %v738 = vpop.permute.xlu0 %737
        %v740 = vadd.f32 %v736, %v738
        %741 = vrot.lane.b32.xlu0 %v612, 112
        %v742 = vpop.permute.xlu0 %741
        %v744 = vadd.f32 %v740, %v742
        %v745 = vmax.f32 %v744, 0.0
        %746 = vrot.lane.b32.xlu0 %v591, 120
        %v747 = vpop.permute.xlu0 %746
        %v749 = vadd.f32 %v732, %v747
        %750 = vrot.lane.b32.xlu0 %v612, 116
        %v751 = vpop.permute.xlu0 %750
        %v753 = vadd.f32 %v749, %v751
        %754 = vrot.lane.b32.xlu0 %v634, 112
        %v755 = vpop.permute.xlu0 %754
        %v757 = vadd.f32 %v753, %v755
        %v758 = vmax.f32 %v757, 0.0
        %v759 = vmax.f32 %v745, %v758
        %760 = vrot.lane.b32.xlu0 %v612, 120
        %v761 = vpop.permute.xlu0 %760
        %v763 = vadd.f32 %v732, %v761
        %764 = vrot.lane.b32.xlu0 %v634, 116
        %v765 = vpop.permute.xlu0 %764
        %v767 = vadd.f32 %v763, %v765
        %768 = vrot.lane.b32.xlu0 %v656, 112
        %v769 = vpop.permute.xlu0 %768
        %v771 = vadd.f32 %v767, %v769
        %v772 = vmax.f32 %v771, 0.0
        %v773 = vmax.f32 %v759, %v772
        %774 = vrot.lane.b32.xlu0 %v634, 120
        %v775 = vpop.permute.xlu0 %774
        %v777 = vadd.f32 %v732, %v775
        %778 = vrot.lane.b32.xlu0 %v656, 116
        %v779 = vpop.permute.xlu0 %778
        %v781 = vadd.f32 %v777, %v779
        %782 = vrot.lane.b32.xlu0 %v678, 112
        %v783 = vpop.permute.xlu0 %782
        %v785 = vadd.f32 %v781, %v783
        %v786 = vmax.f32 %v785, 0.0
        %v787 = vmax.f32 %v773, %v786
        %788 = vrot.lane.b32.xlu0 %v656, 120
        %v789 = vpop.permute.xlu0 %788
        %v791 = vadd.f32 %v732, %v789
        %792 = vrot.lane.b32.xlu0 %v678, 116
        %v793 = vpop.permute.xlu0 %792
        %v795 = vadd.f32 %v791, %v793
        %796 = vrot.lane.b32.xlu0 %v700, 112
        %v797 = vpop.permute.xlu0 %796
        %v799 = vadd.f32 %v795, %v797
        %v800 = vmax.f32 %v799, 0.0
        %v801 = vmax.f32 %v787, %v800
        %802 = vrot.lane.b32.xlu0 %v678, 120
        %v803 = vpop.permute.xlu0 %802
        %v805 = vadd.f32 %v732, %v803
        %806 = vrot.lane.b32.xlu0 %v700, 116
        %v807 = vpop.permute.xlu0 %806
        %v809 = vadd.f32 %v805, %v807
        %810 = vrot.lane.b32.xlu0 %v722, 112
        %v811 = vpop.permute.xlu0 %810
        %v813 = vadd.f32 %v809, %v811
        %v814 = vmax.f32 %v813, 0.0
        %v815 = vmax.f32 %v801, %v814
        %v816 = vlaneseq
        %v817 = vshrl.u32 %v816, 7
        %v818 = vsub.s32 2, %v817
        %v819 = vrot.slane %v542, %v818
        %820 = vrot.lane.b32.xlu0 %v575, 108
        %v821 = vpop.permute.xlu0 %820
        %v823 = vadd.f32 %v819, %v821
        %824 = vrot.lane.b32.xlu0 %v591, 104
        %v825 = vpop.permute.xlu0 %824
        %v827 = vadd.f32 %v823, %v825
        %828 = vrot.lane.b32.xlu0 %v612, 100
        %v829 = vpop.permute.xlu0 %828
        %v831 = vadd.f32 %v827, %v829
        %832 = vrot.lane.b32.xlu0 %v634, 96
        %v833 = vpop.permute.xlu0 %832
        %v835 = vadd.f32 %v831, %v833
        %v836 = vmax.f32 %v835, 0.0
        %837 = vrot.lane.b32.xlu0 %v591, 108
        %v838 = vpop.permute.xlu0 %837
        %v840 = vadd.f32 %v819, %v838
        %841 = vrot.lane.b32.xlu0 %v612, 104
        %v842 = vpop.permute.xlu0 %841
        %v844 = vadd.f32 %v840, %v842
        %845 = vrot.lane.b32.xlu0 %v634, 100
        %v846 = vpop.permute.xlu0 %845
        %v848 = vadd.f32 %v844, %v846
        %849 = vrot.lane.b32.xlu0 %v656, 96
        %v850 = vpop.permute.xlu0 %849
        %v852 = vadd.f32 %v848, %v850
        %v853 = vmax.f32 %v852, 0.0
        %v854 = vmax.f32 %v836, %v853
        %855 = vrot.lane.b32.xlu0 %v612, 108
        %v856 = vpop.permute.xlu0 %855
        %v858 = vadd.f32 %v819, %v856
        %859 = vrot.lane.b32.xlu0 %v634, 104
        %v860 = vpop.permute.xlu0 %859
        %v862 = vadd.f32 %v858, %v860
        %863 = vrot.lane.b32.xlu0 %v656, 100
        %v864 = vpop.permute.xlu0 %863
        %v866 = vadd.f32 %v862, %v864
        %867 = vrot.lane.b32.xlu0 %v678, 96
        %v868 = vpop.permute.xlu0 %867
        %v870 = vadd.f32 %v866, %v868
        %v871 = vmax.f32 %v870, 0.0
        %v872 = vmax.f32 %v854, %v871
        %873 = vrot.lane.b32.xlu0 %v634, 108
        %v874 = vpop.permute.xlu0 %873
        %v876 = vadd.f32 %v819, %v874
        %877 = vrot.lane.b32.xlu0 %v656, 104
        %v878 = vpop.permute.xlu0 %877
        %v880 = vadd.f32 %v876, %v878
        %881 = vrot.lane.b32.xlu0 %v678, 100
        %v882 = vpop.permute.xlu0 %881
        %v884 = vadd.f32 %v880, %v882
        %885 = vrot.lane.b32.xlu0 %v700, 96
        %v886 = vpop.permute.xlu0 %885
        %v888 = vadd.f32 %v884, %v886
        %v889 = vmax.f32 %v888, 0.0
        %v890 = vmax.f32 %v872, %v889
        %891 = vrot.lane.b32.xlu0 %v656, 108
        %v892 = vpop.permute.xlu0 %891
        %v894 = vadd.f32 %v819, %v892
        %895 = vrot.lane.b32.xlu0 %v678, 104
        %v896 = vpop.permute.xlu0 %895
        %v898 = vadd.f32 %v894, %v896
        %899 = vrot.lane.b32.xlu0 %v700, 100
        %v900 = vpop.permute.xlu0 %899
        %v902 = vadd.f32 %v898, %v900
        %903 = vrot.lane.b32.xlu0 %v722, 96
        %v904 = vpop.permute.xlu0 %903
        %v906 = vadd.f32 %v902, %v904
        %v907 = vmax.f32 %v906, 0.0
        %v908 = vmax.f32 %v890, %v907
        %v909 = vld [vmem:[#allocation5] sm:$0xff]
        %v910 = vld [vmem:[#allocation5 + $0x8] sm:$0xff]
        %v911 = vld [vmem:[#allocation8] sm:$0xff]
        %v912 = vld [vmem:[#allocation8 + $0x8] sm:$0xff]
        %v913 = vld [vmem:[#allocation8 + $0x10] sm:$0xff]
        %v914 = vld [vmem:[#allocation8 + $0x18] sm:$0xff]
        %v915 = vld [vmem:[#allocation8 + $0x20] sm:$0xff]
        %v916 = vld [vmem:[#allocation8 + $0x28] sm:$0xff]
        %v917 = vld [vmem:[#allocation8 + $0x30] sm:$0xff]
        %v918 = vld [vmem:[#allocation8 + $0x38] sm:$0xff]
        %v919 = vld [vmem:[#allocation8 + $0x40] sm:$0xff]
        %v920 = vld [vmem:[#allocation8 + $0x48] sm:$0xff]
        %v921 = vld [vmem:[#allocation8 + $0x50] sm:$0xff]
        %v922 = vld [vmem:[#allocation8 + $0x58] sm:$0xff]
        %v923 = vld [vmem:[#allocation8 + $0x60] sm:$0xff]
        %v924 = vld [vmem:[#allocation8 + $0x68] sm:$0xff]
        %v925 = vld [vmem:[#allocation8 + $0x70] sm:$0xff]
        %v926 = vld [vmem:[#allocation8 + $0x78] sm:$0xff]
        %v927 = vld [vmem:[#allocation8 + $0x80] sm:$0xff]
        %v928 = vld [vmem:[#allocation8 + $0x88] sm:$0xff]
        %v929 = vld [vmem:[#allocation8 + $0x90] sm:$0xff]
        %v930 = vld [vmem:[#allocation8 + $0x98] sm:$0xff]
        %v931 = vld [vmem:[#allocation8 + $0xa0] sm:$0xff]
        %v932 = vld [vmem:[#allocation8 + $0xa8] sm:$0xff]
        %v933 = vld [vmem:[#allocation8 + $0xb0] sm:$0xff]
        %v934 = vld [vmem:[#allocation8 + $0xb8] sm:$0xff]
        %v935 = vld [vmem:[#allocation8 + $0xc0] sm:$0xff]
        %v936 = vld [vmem:[#allocation8 + $0xc8] sm:$0xff]
        %v937 = vld [vmem:[#allocation8 + $0xd0] sm:$0xff]
        %v938 = vld [vmem:[#allocation8 + $0xd8] sm:$0xff]
        %v939 = vld [vmem:[#allocation8 + $0xe0] sm:$0xff]
        %v940 = vld [vmem:[#allocation8 + $0xe8] sm:$0xff]
        %v941 = vld [vmem:[#allocation8 + $0xf0] sm:$0xff]
        %v942 = vld [vmem:[#allocation8 + $0xf8] sm:$0xff]
        %v943 = vld [vmem:[%s5] sm:$0x1]
        %v945 = vlaneseq
        %v946 = vshrl.u32 %v945, 7
        %v947 = vsub.s32 0, %v946
        %v948 = vrot.slane %v943, %v947
        %950 = vmatprep.subr.mxu0 0.0
        %951 = vmatpush1.msra.mxu0 %v911
        %952 = vmatprep.subr.mxu0 0.0
        %953 = vmatpush1.msra.mxu0 %v912
        %954 = vmatprep.subr.mxu0 0.0
        %955 = vmatpush1.msra.mxu0 %v913
        %956 = vmatprep.subr.mxu0 0.0
        %957 = vmatpush1.msra.mxu0 %v914
        %958 = vmatprep.subr.mxu0 0.0
        %959 = vmatpush1.msra.mxu0 %v915
        %960 = vmatprep.subr.mxu0 0.0
        %961 = vmatpush1.msra.mxu0 %v916
        %962 = vmatprep.subr.mxu0 0.0
        %963 = vmatpush1.msra.mxu0 %v917
        %964 = vmatprep.subr.mxu0 0.0
        %965 = vmatpush1.msra.mxu0 %v918
        %966 = vmatprep.subr.mxu0 0.0
        %967 = vmatpush1.msra.mxu0 %v919
        %968 = vmatprep.subr.mxu0 0.0
        %969 = vmatpush1.msra.mxu0 %v920
        %970 = vmatprep.subr.mxu0 0.0
        %971 = vmatpush1.msra.mxu0 %v921
        %972 = vmatprep.subr.mxu0 0.0
        %973 = vmatpush1.msra.mxu0 %v922
        %974 = vmatprep.subr.mxu0 0.0
        %975 = vmatpush1.msra.mxu0 %v923
        %976 = vmatprep.subr.mxu0 0.0
        %977 = vmatpush1.msra.mxu0 %v924
        %978 = vmatprep.subr.mxu0 0.0
        %979 = vmatpush1.msra.mxu0 %v925
        %980 = vmatprep.subr.mxu0 0.0
        %981 = vmatpush1.msra.mxu0 %v926
        %982 = vmatprep.subr.mxu0 0.0
        %983 = vmatpush1.msra.mxu0 %v927
        %984 = vmatprep.subr.mxu0 0.0
        %985 = vmatpush1.msra.mxu0 %v928
        %986 = vmatprep.subr.mxu0 0.0
        %987 = vmatpush1.msra.mxu0 %v929
        %988 = vmatprep.subr.mxu0 0.0
        %989 = vmatpush1.msra.mxu0 %v930
        %990 = vmatprep.subr.mxu0 0.0
        %991 = vmatpush1.msra.mxu0 %v931
        %992 = vmatprep.subr.mxu0 0.0
        %993 = vmatpush1.msra.mxu0 %v932
        %994 = vmatprep.subr.mxu0 0.0
        %995 = vmatpush1.msra.mxu0 %v933
        %996 = vmatprep.subr.mxu0 0.0
        %997 = vmatpush1.msra.mxu0 %v934
        %998 = vmatprep.subr.mxu0 0.0
        %999 = vmatpush1.msra.mxu0 %v935
        %1000 = vmatprep.subr.mxu0 0.0
        %1001 = vmatpush1.msra.mxu0 %v936
        %1002 = vmatprep.subr.mxu0 0.0
        %1003 = vmatpush1.msra.mxu0 %v937
        %1004 = vmatprep.subr.mxu0 0.0
        %1005 = vmatpush1.msra.mxu0 %v938
        %1006 = vmatprep.subr.mxu0 0.0
        %1007 = vmatpush1.msra.mxu0 %v939
        %1008 = vmatprep.subr.mxu0 0.0
        %1009 = vmatpush1.msra.mxu0 %v940
        %1010 = vmatprep.subr.mxu0 0.0
        %1011 = vmatpush1.msra.mxu0 %v941
        %1012 = vmatprep.subr.mxu0 0.0
        %1013 = vmatpush1.msra.mxu0 %v942
        %1014 = vmatprep.mubr.f32.mxu0 %v910
        %1015 = vmatmul.mubr.f32.gmra.mrb[0].mxu0 %v909
        %v1016 = vpop.f32.mrb[0].mxu0
        %v1017 = vadd.f32 %v948, %v1016
        %v1018 = vpop.f32.mrb[0].mxu0
        %1019 = vdwg.mxu0
        %v1020 = vmax.f32 %v1017, 0.0
        %1022 = vrot.lane.b32.xlu0 %v815, 4
        %v1023 = vpop.permute.xlu0 %1022
        %1026 = vrot.lane.b32.xlu0 %v908, 8
        %v1027 = vpop.permute.xlu0 %1026
        %1030 = vrot.lane.b32.xlu0 %v1020, 12
        %v1031 = vpop.permute.xlu0 %1030
        %vm1033 = vcmask 31744
        %v1034 = vsel %vm1033, %v728, %v1023
        %vm1035 = vcmask 64512
        %v1036 = vsel %vm1035, %v1034, %v1027
        %vm1037 = vcmask 97280
        %v1038 = vsel %vm1037, %v1036, %v1031
        %v1039 = vpack.c.bf16 %v1038, %v1038
        %v1040 = vpack.c.bf16 %v1031, %v1031
        %v1041 = vld [vmem:[%s355] sm:$0xff]
        %v1042 = vld [vmem:[%s355 + $0x8] sm:$0xff]
        %v1043 = vld [vmem:[%s355 + $0x10] sm:$0xff]
        %v1044 = vld [vmem:[%s355 + $0x18] sm:$0xff]
        %v1045 = vld [vmem:[%s355 + $0x20] sm:$0xff]
        %v1046 = vld [vmem:[%s355 + $0x28] sm:$0xff]
        %v1047 = vld [vmem:[%s355 + $0x30] sm:$0xff]
        %v1048 = vld [vmem:[%s355 + $0x38] sm:$0xff]
        %v1049 = vld [vmem:[%s355 + $0x40] sm:$0xff]
        %v1050 = vld [vmem:[%s355 + $0x48] sm:$0xff]
        %v1051 = vld [vmem:[%s355 + $0x50] sm:$0xff]
        %v1052 = vld [vmem:[%s355 + $0x58] sm:$0xff]
        %v1053 = vld [vmem:[%s355 + $0x60] sm:$0xff]
        %v1054 = vld [vmem:[%s355 + $0x68] sm:$0xff]
        %v1055 = vld [vmem:[%s355 + $0x70] sm:$0xff]
        %v1056 = vld [vmem:[%s355 + $0x78] sm:$0xff]
        %v1057 = vld [vmem:[%s355 + $0x80] sm:$0xff]
        %v1058 = vld [vmem:[%s355 + $0x88] sm:$0xff]
        %v1059 = vld [vmem:[%s355 + $0x90] sm:$0xff]
        %v1060 = vld [vmem:[%s355 + $0x98] sm:$0xff]
        %v1061 = vld [vmem:[%s355 + $0xa0] sm:$0xff]
        %v1062 = vld [vmem:[%s355 + $0xa8] sm:$0xff]
        %v1063 = vld [vmem:[%s355 + $0xb0] sm:$0xff]
        %v1064 = vld [vmem:[%s355 + $0xb8] sm:$0xff]
        %v1065 = vld [vmem:[%s355 + $0xc0] sm:$0xff]
        %v1066 = vld [vmem:[%s355 + $0xc8] sm:$0xff]
        %v1067 = vld [vmem:[%s355 + $0xd0] sm:$0xff]
        %v1068 = vld [vmem:[%s355 + $0xd8] sm:$0xff]
        %v1069 = vld [vmem:[%s355 + $0xe0] sm:$0xff]
        %v1070 = vld [vmem:[%s355 + $0xe8] sm:$0xff]
        %v1071 = vld [vmem:[%s355 + $0xf0] sm:$0xff]
        %v1072 = vld [vmem:[%s355 + $0xf8] sm:$0xff]
        %v1073 = vld [vmem:[%s355 + $0x100] sm:$0xff]
        %v1074 = vld [vmem:[%s355 + $0x108] sm:$0xff]
        %v1075 = vld [vmem:[%s355 + $0x110] sm:$0x33]
        %v1076 = vld [vmem:[%s355 + $0x118] sm:$0x33]
        %v1077 = vld [vmem:[%s396] sm:$0xf]
        %v1079 = vlaneseq
        %v1080 = vshrl.u32 %v1079, 7
        %v1081 = vsub.s32 0, %v1080
        %v1082 = vrot.slane %v1077, %v1081
        %v1083 = vlaneseq
        %v1084 = vshrl.u32 %v1083, 7
        %v1085 = vsub.s32 1, %v1084
        %v1086 = vrot.slane %v1077, %v1085
        %v1087 = vlaneseq
        %v1088 = vshrl.u32 %v1087, 7
        %v1089 = vsub.s32 2, %v1088
        %v1090 = vrot.slane %v1077, %v1089
        %v1091 = vlaneseq
        %v1092 = vshrl.u32 %v1091, 7
        %v1093 = vsub.s32 3, %v1092
        %v1094 = vrot.slane %v1077, %v1093
        %v1135 = vunpack.c.l.b16 %v1041
        %v1136 = vunpack.c.h.b16 %v1041
        %v1137 = vunpack.c.l.b16 %v1042
        %v1138 = vunpack.c.h.b16 %v1042
        %v1139 = vunpack.c.l.b16 %v1043
        %v1140 = vunpack.c.h.b16 %v1043
        %v1141 = vunpack.c.l.b16 %v1044
        %v1142 = vunpack.c.h.b16 %v1044
        %v1143 = vunpack.c.l.b16 %v1045
        %v1144 = vunpack.c.h.b16 %v1045
        %v1145 = vunpack.c.l.b16 %v1046
        %v1146 = vunpack.c.h.b16 %v1046
        %v1147 = vunpack.c.l.b16 %v1047
        %v1148 = vunpack.c.h.b16 %v1047
        %v1149 = vunpack.c.l.b16 %v1048
        %v1150 = vunpack.c.h.b16 %v1048
        %v1151 = vunpack.c.l.b16 %v1049
        %v1152 = vunpack.c.h.b16 %v1049
        %v1153 = vunpack.c.l.b16 %v1050
        %v1154 = vunpack.c.h.b16 %v1050
        %v1155 = vunpack.c.l.b16 %v1051
        %v1156 = vunpack.c.h.b16 %v1051
        %v1157 = vunpack.c.l.b16 %v1052
        %v1158 = vunpack.c.h.b16 %v1052
        %v1159 = vunpack.c.l.b16 %v1053
        %v1160 = vunpack.c.h.b16 %v1053
        %v1161 = vunpack.c.l.b16 %v1054
        %v1162 = vunpack.c.h.b16 %v1054
        %v1163 = vunpack.c.l.b16 %v1055
        %v1164 = vunpack.c.h.b16 %v1055
        %v1165 = vunpack.c.l.b16 %v1056
        %v1166 = vunpack.c.h.b16 %v1056
        %v1167 = vunpack.c.l.b16 %v1057
        %v1168 = vunpack.c.h.b16 %v1057
        %v1169 = vunpack.c.l.b16 %v1058
        %v1170 = vunpack.c.h.b16 %v1058
        %v1171 = vunpack.c.l.b16 %v1059
        %v1172 = vunpack.c.h.b16 %v1059
        %v1173 = vunpack.c.l.b16 %v1060
        %v1174 = vunpack.c.h.b16 %v1060
        %v1175 = vunpack.c.l.b16 %v1061
        %v1176 = vunpack.c.h.b16 %v1061
        %v1177 = vunpack.c.l.b16 %v1062
        %v1178 = vunpack.c.h.b16 %v1062
        %v1179 = vunpack.c.l.b16 %v1063
        %v1180 = vunpack.c.h.b16 %v1063
        %v1181 = vunpack.c.l.b16 %v1064
        %v1182 = vunpack.c.h.b16 %v1064
        %v1183 = vunpack.c.l.b16 %v1065
        %v1184 = vunpack.c.h.b16 %v1065
        %v1185 = vunpack.c.l.b16 %v1066
        %v1186 = vunpack.c.h.b16 %v1066
        %v1187 = vunpack.c.l.b16 %v1067
        %v1188 = vunpack.c.h.b16 %v1067
        %v1189 = vunpack.c.l.b16 %v1068
        %v1190 = vunpack.c.h.b16 %v1068
        %v1191 = vunpack.c.l.b16 %v1069
        %v1192 = vunpack.c.h.b16 %v1069
        %v1193 = vunpack.c.l.b16 %v1070
        %v1194 = vunpack.c.h.b16 %v1070
        %v1195 = vunpack.c.l.b16 %v1071
        %v1196 = vunpack.c.h.b16 %v1071
        %v1197 = vunpack.c.l.b16 %v1072
        %v1198 = vunpack.c.h.b16 %v1072
        %v1199 = vunpack.c.l.b16 %v1073
        %v1200 = vunpack.c.h.b16 %v1073
        %v1201 = vunpack.c.l.b16 %v1074
        %v1202 = vunpack.c.h.b16 %v1074
        %v1203 = vunpack.c.l.b16 %v1075
        %v1204 = vunpack.c.h.b16 %v1075
        %v1205 = vunpack.c.l.b16 %v1076
        %v1206 = vunpack.c.h.b16 %v1076
        %v1207 = vpack.c.b16 %v1139, %v1135
        %v1208 = vpack.c.b16 %v1140, %v1136
        %v1209 = vpack.c.b16 %v1141, %v1137
        %v1210 = vpack.c.b16 %v1142, %v1138
        %v1211 = vpack.c.b16 %v1147, %v1143
        %v1212 = vpack.c.b16 %v1148, %v1144
        %v1213 = vpack.c.b16 %v1149, %v1145
        %v1214 = vpack.c.b16 %v1150, %v1146
        %v1215 = vpack.c.b16 %v1155, %v1151
        %v1216 = vpack.c.b16 %v1156, %v1152
        %v1217 = vpack.c.b16 %v1157, %v1153
        %v1218 = vpack.c.b16 %v1158, %v1154
        %v1219 = vpack.c.b16 %v1163, %v1159
        %v1220 = vpack.c.b16 %v1164, %v1160
        %v1221 = vpack.c.b16 %v1165, %v1161
        %v1222 = vpack.c.b16 %v1166, %v1162
        %v1223 = vpack.c.b16 %v1171, %v1167
        %v1224 = vpack.c.b16 %v1172, %v1168
        %v1225 = vpack.c.b16 %v1173, %v1169
        %v1226 = vpack.c.b16 %v1174, %v1170
        %v1227 = vpack.c.b16 %v1179, %v1175
        %v1228 = vpack.c.b16 %v1180, %v1176
        %v1229 = vpack.c.b16 %v1181, %v1177
        %v1230 = vpack.c.b16 %v1182, %v1178
        %v1231 = vpack.c.b16 %v1187, %v1183
        %v1232 = vpack.c.b16 %v1188, %v1184
        %v1233 = vpack.c.b16 %v1189, %v1185
        %v1234 = vpack.c.b16 %v1190, %v1186
        %v1235 = vpack.c.b16 %v1195, %v1191
        %v1236 = vpack.c.b16 %v1196, %v1192
        %v1237 = vpack.c.b16 %v1197, %v1193
        %v1238 = vpack.c.b16 %v1198, %v1194
        %v1239 = vpack.c.b16 %v1203, %v1199
        %v1240 = vpack.c.b16 %v1204, %v1200
        %v1241 = vpack.c.b16 %v1205, %v1201
        %v1242 = vpack.c.b16 %v1206, %v1202
        %v1276 = vsel %vm1037, %v1040, 0
        %vm1278 = vcmask 1045504
        %v1280 = vsel %vm1278, %v1239, 0
        %v1283 = vsel %vm1278, %v1240, 0
        %v1286 = vsel %vm1278, %v1241, 0
        %v1289 = vsel %vm1278, %v1242, 0
        %1291 = vmatprep.subr.bf16.mxu0 %v1208
        %1292 = vmatpush1.bf16.msra.mxu0 %v1207
        %1293 = vmatprep.subr.bf16.mxu0 %v1212
        %1294 = vmatpush1.bf16.msra.mxu0 %v1211
        %1295 = vmatprep.subr.bf16.mxu0 %v1216
        %1296 = vmatpush1.bf16.msra.mxu0 %v1215
        %1297 = vmatprep.subr.bf16.mxu0 %v1220
        %1298 = vmatpush1.bf16.msra.mxu0 %v1219
        %1299 = vmatprep.subr.bf16.mxu0 %v1224
        %1300 = vmatpush1.bf16.msra.mxu0 %v1223
        %1301 = vmatprep.subr.bf16.mxu0 %v1228
        %1302 = vmatpush1.bf16.msra.mxu0 %v1227
        %1303 = vmatprep.subr.bf16.mxu0 %v1232
        %1304 = vmatpush1.bf16.msra.mxu0 %v1231
        %1305 = vmatprep.subr.bf16.mxu0 %v1236
        %1306 = vmatpush1.bf16.msra.mxu0 %v1235
        %1307 = vmatprep.subr.bf16.mxu0 %v1283
        %1308 = vmatpush1.bf16.msra.mxu0 %v1280
        %1309 = vmatprep.subr.bf16.mxu0 0
        %1310 = vmatpush1.bf16.msra.mxu0 0
        %1311 = vmatprep.subr.bf16.mxu0 0
        %1312 = vmatpush1.bf16.msra.mxu0 0
        %1313 = vmatprep.subr.bf16.mxu0 0
        %1314 = vmatpush1.bf16.msra.mxu0 0
        %1315 = vmatprep.subr.bf16.mxu0 0
        %1316 = vmatpush1.bf16.msra.mxu0 0
        %1317 = vmatprep.subr.bf16.mxu0 0
        %1318 = vmatpush1.bf16.msra.mxu0 0
        %1319 = vmatprep.subr.bf16.mxu0 0
        %1320 = vmatpush1.bf16.msra.mxu0 0
        %1321 = vmatprep.subr.bf16.mxu0 0
        %1322 = vmatpush1.bf16.msra.mxu0 0
        %1323 = vmatprep.mubr.bf16.mxu0 %v1276
        %1324 = vmatmul.mubr.bf16.gmra.mrb[0].mxu0 %v1039
        %v1325 = vpop.f32.mrb[0].mxu0
        %v1326 = vadd.f32 %v1082, %v1325
        %v1327 = vpop.f32.mrb[0].mxu0
        %v1328 = vadd.f32 %v1086, %v1327
        %v1329 = vpop.f32.mrb[0].mxu0
        %v1330 = vpop.f32.mrb[0].mxu0
        %1331 = vdwg.mxu0
        %1332 = vmatprep.subr.bf16.mxu0 %v1210
        %1333 = vmatpush1.bf16.msra.mxu0 %v1209
        %1334 = vmatprep.subr.bf16.mxu0 %v1214
        %1335 = vmatpush1.bf16.msra.mxu0 %v1213
        %1336 = vmatprep.subr.bf16.mxu0 %v1218
        %1337 = vmatpush1.bf16.msra.mxu0 %v1217
        %1338 = vmatprep.subr.bf16.mxu0 %v1222
        %1339 = vmatpush1.bf16.msra.mxu0 %v1221
        %1340 = vmatprep.subr.bf16.mxu0 %v1226
        %1341 = vmatpush1.bf16.msra.mxu0 %v1225
        %1342 = vmatprep.subr.bf16.mxu0 %v1230
        %1343 = vmatpush1.bf16.msra.mxu0 %v1229
        %1344 = vmatprep.subr.bf16.mxu0 %v1234
        %1345 = vmatpush1.bf16.msra.mxu0 %v1233
        %1346 = vmatprep.subr.bf16.mxu0 %v1238
        %1347 = vmatpush1.bf16.msra.mxu0 %v1237
        %1348 = vmatprep.subr.bf16.mxu0 %v1289
        %1349 = vmatpush1.bf16.msra.mxu0 %v1286
        %1350 = vmatprep.subr.bf16.mxu0 0
        %1351 = vmatpush1.bf16.msra.mxu0 0
        %1352 = vmatprep.subr.bf16.mxu0 0
        %1353 = vmatpush1.bf16.msra.mxu0 0
        %1354 = vmatprep.subr.bf16.mxu0 0
        %1355 = vmatpush1.bf16.msra.mxu0 0
        %1356 = vmatprep.subr.bf16.mxu0 0
        %1357 = vmatpush1.bf16.msra.mxu0 0
        %1358 = vmatprep.subr.bf16.mxu0 0
        %1359 = vmatpush1.bf16.msra.mxu0 0
        %1360 = vmatprep.subr.bf16.mxu0 0
        %1361 = vmatpush1.bf16.msra.mxu0 0
        %1362 = vmatprep.subr.bf16.mxu0 0
        %1363 = vmatpush1.bf16.msra.mxu0 0
        %1364 = vmatprep.mubr.bf16.mxu0 %v1276
        %1365 = vmatmul.mubr.bf16.gmra.mrb[0].mxu0 %v1039
        %v1366 = vpop.f32.mrb[0].mxu0
        %v1367 = vadd.f32 %v1090, %v1366
        %v1368 = vpop.f32.mrb[0].mxu0
        %v1369 = vadd.f32 %v1094, %v1368
        %v1370 = vpop.f32.mrb[0].mxu0
        %v1371 = vpop.f32.mrb[0].mxu0
        %1372 = vdwg.mxu0
        %1373 = vst [vmem:[%s391] sm:$0xff] %v1326
        %1374 = vst [vmem:[%s391 + $0x8] sm:$0xff] %v1328
        %1375 = vst [vmem:[%s391 + $0x10] sm:$0xff] %v1367
        %1376 = vst [vmem:[%s391 + $0x18] sm:$0xff] %v1369
        %s1377 = sand.u32 %s211, 1
        %s1378 = scalar_lea.sflag [#allocation4], %s1377
        %s1379 = sand.u32 %s211, 1
        %s1380 = smul.addr %s1379, 32
        %s1381 = scalar_lea.vmem [#allocation11], %s1380
        // Predicated region
        $region73: #{tpu_custom_call.1} parent=51 // pred_check
          %p1382 = pneg %p221
        $region74: #{tpu_custom_call.1} parent=51 // pred_check_branch
          %1384 = sbr.rel (%p1382) target = $region76
        $region75: #{tpu_custom_call.1} parent=51 // pred_region
          %s1385 = smul.u32 4, %s25
          %s1387 = ssub.s32 512, 512
          %1388 = vsyncadd %s1378, %s1387
          %s1389 = smul.addr %s1385, 128
          %s1390 = scalar_lea.hbm %s8, %s1389
          %s1392 = sshll.u32 %s1381, 4
          %s1393 = int_to_ptr.vmem [resolvable:$true] %s1392
          %1395 = dma.vmem_to_hbm [thread:$0]  %s1393, 512, %s1390, %s1378
        $region76: #{tpu_custom_call.1} parent=51 // pred_fallthru
          _
      $region52: #{tpu_custom_call.1} parent=5 // pred_fallthru
        _
      %p1396 = scmp.le.s32.totalorder 2, %s20
      // Predicated region
      $region77: #{tpu_custom_call.1} parent=5 // pred_check
        %p1397 = pneg %p1396
      $region78: #{tpu_custom_call.1} parent=5 // pred_check_branch
        %1399 = sbr.rel (%p1397) target = $region80
      $region79: #{tpu_custom_call.1} parent=5 // pred_region
        %s1400 = ssub.s32 %s20, 2
        // Predicated region
        $region81: #{tpu_custom_call.1} parent=79 // pred_check
          %p1401 = pneg %p227
        $region82: #{tpu_custom_call.1} parent=79 // pred_check_branch
          %1403 = sbr.rel (%p1401) target = $region84
        $region83: #{tpu_custom_call.1} parent=79 // pred_region
          %s1404 = sand.u32 %s212, 1
          %s1405 = scalar_lea.sflag [#allocation4], %s1404
          %s1406 = sand.u32 %s212, 1
          %s1407 = smul.addr %s1406, 32
          %s1408 = scalar_lea.vmem [#allocation11], %s1407
          %1409 = dma.done %s1405, 512
        $region84: #{tpu_custom_call.1} parent=79 // pred_fallthru
          _
      $region80: #{tpu_custom_call.1} parent=5 // pred_fallthru
        _
    $region6: #{tpu_custom_call.1} parent=1 // loop_footer
      %s24 = sadd.s32 1, %s20
    $region7: #{tpu_custom_call.1} parent=1 // loop_footer_branch
      %19 = sbr.rel target = $region3
    $region8: #{tpu_custom_call.1} parent=1 // loop_exit
      _
    %1410 = vsyncpa [#allocation3], 1
    %s1411 = scalar_lea.sflag [#allocation3], 1
    %1412 = vsyncpa %s1411, 1
    %1413 = vsyncpa [#allocation6], 1
    %1414 = vsyncpa [#allocation9], 1
    %1415 = vsyncpa [#allocation4], 1
    %s1416 = scalar_lea.sflag [#allocation4], 1
    %1417 = vsyncpa %s1416, 1

</llo_original>
